<compile_context>
chip_gen: v7x
topology: tpu7x:2x2x1
jax: 0.10.0
libtpu: 0.0.40
codegen_flags: <defaults>
</compile_context>

<pallas_src>
import functools

import jax
import jax.numpy as jnp
from jax.experimental import pallas as pl
from jax.experimental.pallas import tpu as pltpu


def _layernorm(x, w, b, eps=1e-5):
    mu = jnp.mean(x, axis=-1, keepdims=True)
    xc = x - mu
    var = jnp.mean(xc * xc, axis=-1, keepdims=True)
    return xc * jax.lax.rsqrt(var + eps) * w + b


def _gelu_tanh(x):
    # TODO(synk): torch nn.GELU default is exact erf; tanh approximation used here
    # (max abs deviation ~1e-3) since erf lowering support varies across Mosaic versions.
    c = 0.7978845608028654  # sqrt(2/pi)
    return 0.5 * x * (1.0 + jnp.tanh(c * (x + 0.044715 * x * x * x)))


def cross_attn_block_kernel(
        xq_ref, xkv_ref,
        ln1q_w_ref, ln1q_b_ref, ln1kv_w_ref, ln1kv_b_ref,
        wq_ref, wkv_ref, wproj_ref, bproj_ref,
        ln2_w_ref, ln2_b_ref,
        w1_ref, b1_ref, w2_ref, b2_ref,
        o_ref, o_sc, *, num_heads):
    f32 = jnp.float32
    C = xq_ref.shape[-1]
    hd = C // num_heads
    wdt = wq_ref.dtype  # bf16 (matmul operand dtype); accumulation is f32

    xq = xq_ref[...].astype(f32)    # (TQ, C)  residual / query rows (x[0] tile)
    xkv = xkv_ref[...].astype(f32)  # (N,  C)  full key/value stream (x[1])

    q_in = _layernorm(xq, ln1q_w_ref[...].astype(f32), ln1q_b_ref[...].astype(f32))
    kv_in = _layernorm(xkv, ln1kv_w_ref[...].astype(f32), ln1kv_b_ref[...].astype(f32))

    # Full-width projections (MXU lanes full); attention scale is folded into Wq.
    q_all = jnp.dot(q_in.astype(wdt), wq_ref[...], preferred_element_type=f32)     # (TQ, C)
    kv_all = jnp.dot(kv_in.astype(wdt), wkv_ref[...], preferred_element_type=f32)  # (N, 2C)

    # Per-head attention.  Each head's output is written to a (TQ, C) VMEM
    # scratch at lane offset h*hd so the output projection below is a single
    # full-contraction matmul (and per-iteration temporaries die at the store).
    for h in range(num_heads):
        lo, hi = h * hd, (h + 1) * hd
        qh = q_all[:, lo:hi].astype(wdt)        # (TQ, hd), scale already applied
        kh = kv_all[:, lo:hi].astype(wdt)       # (N, hd)
        vh = kv_all[:, C + lo:C + hi]           # (N, hd) f32
        s = jax.lax.dot_general(qh, kh, (((1,), (1,)), ((), ())),
                                preferred_element_type=f32)          # (TQ, N) = q k^T
        s = s - jnp.max(s, axis=-1, keepdims=True)
        p = jnp.exp(s)
        p = p * pl.reciprocal(jnp.sum(p, axis=-1, keepdims=True), approx=True)
        # TODO(synk): attn_drop / proj_drop / drop_path are identity in eval mode.
        o_sc[:, lo:hi] = jnp.dot(p.astype(wdt), vh.astype(wdt),
                                 preferred_element_type=f32)         # (TQ, hd)

    # Single output projection with a full C-deep contraction + first residual.
    attn = jnp.dot(o_sc[...].astype(wdt), wproj_ref[...],
                   preferred_element_type=f32) + bproj_ref[...].astype(f32)
    x1 = xq + attn

    # MLP branch + second residual.
    h2 = _layernorm(x1, ln2_w_ref[...].astype(f32), ln2_b_ref[...].astype(f32))
    m = jnp.dot(h2.astype(wdt), w1_ref[...],
                preferred_element_type=f32) + b1_ref[...].astype(f32)
    m = _gelu_tanh(m)
    m = jnp.dot(m.astype(wdt), w2_ref[...],
                preferred_element_type=f32) + b2_ref[...].astype(f32)

    o_ref[...] = (x1 + m).astype(o_ref.dtype)


def pack_cross_attention_params(params, *, num_heads, weight_dtype=jnp.bfloat16):
    """One-time packing of torch-layout (out, in) weights into kernel layout.

    Hoisted out of the forward path so per-call work is just the pallas_call.
    """
    C = params["q_w"].shape[0]
    hd = C // num_heads
    scale = float(hd) ** -0.5
    row = lambda v: jnp.asarray(v, jnp.float32).reshape(1, -1)
    wd = lambda w: jnp.asarray(w, weight_dtype)
    return dict(
        ln1q_w=row(params["ln1q_w"]), ln1q_b=row(params["ln1q_b"]),
        ln1kv_w=row(params["ln1kv_w"]), ln1kv_b=row(params["ln1kv_b"]),
        wq=wd(params["q_w"].T * scale),   # (C, C), attention scale folded in
        wkv=wd(params["kv_w"].T),         # (C, 2C): cols [0:C]=k, [C:2C]=v
        wproj=wd(params["proj_w"].T),     # (C, C)
        bproj=row(params["proj_b"]),
        ln2_w=row(params["ln2_w"]), ln2_b=row(params["ln2_b"]),
        w1=wd(params["fc1_w"].T), b1=row(params["fc1_b"]),   # (C, Hm)
        w2=wd(params["fc2_w"].T), b2=row(params["fc2_b"]),   # (Hm, C)
    )


def _pick_q_tile(N):
    for tq in (256, 128):
        if N % tq == 0:
            return tq
    return N


def cross_attention_block_forward(x_q, x_kv, packed, *, num_heads, q_tile=None):
    """x_q, x_kv: (B, N, C); `packed` from pack_cross_attention_params."""
    B, N, C = x_q.shape
    assert C % num_heads == 0
    Hm = packed["w1"].shape[1]
    TQ = q_tile if q_tile is not None else _pick_q_tile(N)
    assert N % TQ == 0, (N, TQ)
    n_qt = N // TQ

    kernel = functools.partial(cross_attn_block_kernel, num_heads=num_heads)

    # Grid-invariant (weights / vectors): index_map is constant, so Pallas
    # keeps them resident instead of re-streaming each step.
    inv = lambda shape: pl.BlockSpec(shape, lambda b, qi: (0, 0))

    # VMEM budget: weights (bf16) + pipelined activation tiles, with headroom,
    # clamped to >= scoped defaults and <= v7x physical (64 MiB).
    w_bytes = sum(int(v.size) * v.dtype.itemsize for v in packed.values())
    act_bytes = (TQ * C + N * C + TQ * Hm) * 4
    vmem_limit = int(min(64 << 20, max(32 << 20, 2 * w_bytes + 8 * act_bytes + (4 << 20))))

    return pl.pallas_call(
        kernel,
        out_shape=jax.ShapeDtypeStruct((B, N, C), x_q.dtype),
        grid=(B, n_qt),
        in_specs=[
            pl.BlockSpec((None, TQ, C), lambda b, qi: (b, qi, 0)),  # x_q row tile
            pl.BlockSpec((None, N, C), lambda b, qi: (b, 0, 0)),    # x_kv, full rows
            inv((1, C)), inv((1, C)),        # norm1_q  w, b
            inv((1, C)), inv((1, C)),        # norm1_kv w, b
            inv((C, C)),                     # Wq  (scale folded)
            inv((C, 2 * C)),                 # Wkv
            inv((C, C)),                     # Wproj
            inv((1, C)),                     # proj bias
            inv((1, C)), inv((1, C)),        # norm2 w, b
            inv((C, Hm)), inv((1, Hm)),      # fc1 w, b
            inv((Hm, C)), inv((1, C)),       # fc2 w, b
        ],
        out_specs=pl.BlockSpec((None, TQ, C), lambda b, qi: (b, qi, 0)),
        scratch_shapes=[pltpu.VMEM((TQ, C), jnp.float32)],   # per-head output concat
        compiler_params=pltpu.CompilerParams(
            dimension_semantics=("parallel", "parallel"),
            vmem_limit_bytes=vmem_limit),
    )(x_q, x_kv,
      packed["ln1q_w"], packed["ln1q_b"], packed["ln1kv_w"], packed["ln1kv_b"],
      packed["wq"], packed["wkv"], packed["wproj"], packed["bproj"],
      packed["ln2_w"], packed["ln2_b"],
      packed["w1"], packed["b1"], packed["w2"], packed["b2"])


def cross_attention_block_reference(x_q, x_kv, params, *, num_heads):
    """Pure-JAX reference following the torch code path exactly (eval mode, f32)."""
    B, N, C = x_q.shape
    hd = C // num_heads
    scale = float(hd) ** -0.5
    hi = jax.lax.Precision.HIGHEST

    def ln(x, w, b, eps=1e-5):
        mu = jnp.mean(x, axis=-1, keepdims=True)
        var = jnp.mean((x - mu) ** 2, axis=-1, keepdims=True)
        return (x - mu) / jnp.sqrt(var + eps) * w + b

    qn = ln(x_q, params["ln1q_w"], params["ln1q_b"])
    kvn = ln(x_kv, params["ln1kv_w"], params["ln1kv_b"])

    q = jnp.einsum("bnc,dc->bnd", qn, params["q_w"], precision=hi)
    kv = jnp.einsum("bnc,dc->bnd", kvn, params["kv_w"], precision=hi)
    kv = kv.reshape(B, N, 2, num_heads, hd).transpose(2, 0, 3, 1, 4)
    k, v = kv[0], kv[1]                                             # (B, H, N, hd)
    q = q.reshape(B, N, num_heads, hd).transpose(0, 2, 1, 3)        # (B, H, N, hd)

    attn = jnp.einsum("bhnd,bhmd->bhnm", q, k, precision=hi) * scale
    attn = jax.nn.softmax(attn, axis=-1)
    o = jnp.einsum("bhnm,bhmd->bhnd", attn, v, precision=hi)
    o = o.transpose(0, 2, 1, 3).reshape(B, N, C)
    o = jnp.einsum("bnc,dc->bnd", o, params["proj_w"], precision=hi) + params["proj_b"]
    x1 = x_q + o

    h = ln(x1, params["ln2_w"], params["ln2_b"])
    m = jnp.einsum("bnc,hc->bnh", h, params["fc1_w"], precision=hi) + params["fc1_b"]
    m = _gelu_tanh(m)
    m = jnp.einsum("bnh,ch->bnc", m, params["fc2_w"], precision=hi) + params["fc2_b"]
    return x1 + m


if __name__ == "__main__":
    key = jax.random.PRNGKey(0)
    B, N, C = 2, 16, 32         # batch=2, seq=16, hidden=32
    num_heads = 4               # head_dim = 8
    Hm = 4 * C                  # mlp_ratio = 4.0

    ks = jax.random.split(key, 15)
    rnd = lambda k, shape, s=0.1: s * jax.random.normal(k, shape, dtype=jnp.float32)

    # mirrors the torch forward's x[0] (query stream) / x[1] (kv stream)
    x = jax.random.normal(ks[0], (2, B, N, C), dtype=jnp.float32)
    x_q, x_kv = x[0], x[1]

    params = dict(
        ln1q_w=1.0 + rnd(ks[1], (C,)),  ln1q_b=rnd(ks[2], (C,)),
        ln1kv_w=1.0 + rnd(ks[3], (C,)), ln1kv_b=rnd(ks[4], (C,)),
        q_w=rnd(ks[5], (C, C)),                       # qkv_bias=False
        kv_w=rnd(ks[6], (2 * C, C)),
        proj_w=rnd(ks[7], (C, C)),  proj_b=rnd(ks[8], (C,)),
        ln2_w=1.0 + rnd(ks[9], (C,)), ln2_b=rnd(ks[10], (C,)),
        fc1_w=rnd(ks[11], (Hm, C)), fc1_b=rnd(ks[12], (Hm,)),
        fc2_w=rnd(ks[13], (C, Hm)), fc2_b=rnd(ks[14], (C,)),
    )

    # Weight packing is hoisted out of the per-call path (done once).
    packed = pack_cross_attention_params(params, num_heads=num_heads)

    # q_tile=8 exercises the (B, N//TQ) grid tiling path at these small dims.
    out = jax.block_until_ready(
        cross_attention_block_forward(x_q, x_kv, packed, num_heads=num_heads, q_tile=8))
    ref = jax.block_until_ready(
        cross_attention_block_reference(x_q, x_kv, params, num_heads=num_heads))

    assert out.shape == (B, N, C), out.shape
    max_err = float(jnp.max(jnp.abs(out - ref)))
    # Kernel matmuls run with bf16 operands (f32 accumulation); reference is f32
    # HIGHEST, so tolerance reflects bf16 operand rounding.
    assert jnp.allclose(out, ref, atol=2e-2, rtol=2e-2), max_err
    print("KERNEL_OK")
</pallas_src>

<mosaic_0001>
module attributes {stable_mosaic.version = 11 : i64} {
  func.func @cross_attn_block_kernel(%arg0: i32, %arg1: i32, %arg2: memref<1x8x32xf32, #tpu.memory_space<vmem>>, %arg3: memref<1x16x32xf32, #tpu.memory_space<vmem>>, %arg4: memref<1x32xf32, #tpu.memory_space<vmem>>, %arg5: memref<1x32xf32, #tpu.memory_space<vmem>>, %arg6: memref<1x32xf32, #tpu.memory_space<vmem>>, %arg7: memref<1x32xf32, #tpu.memory_space<vmem>>, %arg8: memref<32x32xbf16, #tpu.memory_space<vmem>>, %arg9: memref<32x64xbf16, #tpu.memory_space<vmem>>, %arg10: memref<32x32xbf16, #tpu.memory_space<vmem>>, %arg11: memref<1x32xf32, #tpu.memory_space<vmem>>, %arg12: memref<1x32xf32, #tpu.memory_space<vmem>>, %arg13: memref<1x32xf32, #tpu.memory_space<vmem>>, %arg14: memref<32x128xbf16, #tpu.memory_space<vmem>>, %arg15: memref<1x128xf32, #tpu.memory_space<vmem>>, %arg16: memref<128x32xbf16, #tpu.memory_space<vmem>>, %arg17: memref<1x32xf32, #tpu.memory_space<vmem>>, %arg18: memref<1x8x32xf32, #tpu.memory_space<vmem>>, %arg19: memref<8x32xf32, #tpu.memory_space<vmem>>) attributes {dimension_semantics = [#tpu.dimension_semantics<parallel>, #tpu.dimension_semantics<parallel>], iteration_bounds = array<i64: 2, 2>, scalar_prefetch = 0 : i64, scratch_operands = 1 : i64, tpu.core_type = #tpu.core_type<tc>, window_params = [{transform_indices = @transform_0, window_bounds = array<i64: 1, 8, 32>}, {transform_indices = @transform_1, window_bounds = array<i64: 1, 16, 32>}, {pipeline_mode = #tpu.pipeline_mode<synchronous>, transform_indices = @transform_2, window_bounds = array<i64: 1, 32>}, {pipeline_mode = #tpu.pipeline_mode<synchronous>, transform_indices = @transform_3, window_bounds = array<i64: 1, 32>}, {pipeline_mode = #tpu.pipeline_mode<synchronous>, transform_indices = @transform_4, window_bounds = array<i64: 1, 32>}, {pipeline_mode = #tpu.pipeline_mode<synchronous>, transform_indices = @transform_5, window_bounds = array<i64: 1, 32>}, {pipeline_mode = #tpu.pipeline_mode<synchronous>, transform_indices = @transform_6, window_bounds = array<i64: 32, 32>}, {pipeline_mode = #tpu.pipeline_mode<synchronous>, transform_indices = @transform_7, window_bounds = array<i64: 32, 64>}, {pipeline_mode = #tpu.pipeline_mode<synchronous>, transform_indices = @transform_8, window_bounds = array<i64: 32, 32>}, {pipeline_mode = #tpu.pipeline_mode<synchronous>, transform_indices = @transform_9, window_bounds = array<i64: 1, 32>}, {pipeline_mode = #tpu.pipeline_mode<synchronous>, transform_indices = @transform_10, window_bounds = array<i64: 1, 32>}, {pipeline_mode = #tpu.pipeline_mode<synchronous>, transform_indices = @transform_11, window_bounds = array<i64: 1, 32>}, {pipeline_mode = #tpu.pipeline_mode<synchronous>, transform_indices = @transform_12, window_bounds = array<i64: 32, 128>}, {pipeline_mode = #tpu.pipeline_mode<synchronous>, transform_indices = @transform_13, window_bounds = array<i64: 1, 128>}, {pipeline_mode = #tpu.pipeline_mode<synchronous>, transform_indices = @transform_14, window_bounds = array<i64: 128, 32>}, {pipeline_mode = #tpu.pipeline_mode<synchronous>, transform_indices = @transform_15, window_bounds = array<i64: 1, 32>}, {transform_indices = @transform_16, window_bounds = array<i64: 1, 8, 32>}]} {
    %c0 = arith.constant 0 : index
    %c0_0 = arith.constant 0 : index
    %c0_1 = arith.constant 0 : index
    %0 = vector.load %arg2[%c0, %c0_0, %c0_1] : memref<1x8x32xf32, #tpu.memory_space<vmem>>, vector<1x8x32xf32>
    %1 = vector.shape_cast %0 : vector<1x8x32xf32> to vector<8x32xf32>
    %c0_2 = arith.constant 0 : index
    %c0_3 = arith.constant 0 : index
    %c0_4 = arith.constant 0 : index
    %2 = vector.load %arg3[%c0_2, %c0_3, %c0_4] : memref<1x16x32xf32, #tpu.memory_space<vmem>>, vector<1x16x32xf32>
    %3 = vector.shape_cast %2 : vector<1x16x32xf32> to vector<16x32xf32>
    %c0_5 = arith.constant 0 : index
    %c0_6 = arith.constant 0 : index
    %4 = vector.load %arg4[%c0_5, %c0_6] : memref<1x32xf32, #tpu.memory_space<vmem>>, vector<1x32xf32>
    %c0_7 = arith.constant 0 : index
    %c0_8 = arith.constant 0 : index
    %5 = vector.load %arg5[%c0_7, %c0_8] : memref<1x32xf32, #tpu.memory_space<vmem>>, vector<1x32xf32>
    %cst = arith.constant dense<0.000000e+00> : vector<8xf32>
    %6 = vector.multi_reduction <add>, %1, %cst [1] : vector<8x32xf32> to vector<8xf32>
    %7 = vector.shape_cast %6 : vector<8xf32> to vector<8x1xf32>
    %cst_9 = arith.constant 3.200000e+01 : f32
    %8 = vector.broadcast %cst_9 : f32 to vector<8x1xf32>
    %9 = arith.divf %7, %8 : vector<8x1xf32>
    %10 = vector.broadcast %9 : vector<8x1xf32> to vector<8x32xf32>
    %11 = arith.subf %1, %10 : vector<8x32xf32>
    %12 = arith.mulf %11, %11 : vector<8x32xf32>
    %cst_10 = arith.constant dense<0.000000e+00> : vector<8xf32>
    %13 = vector.multi_reduction <add>, %12, %cst_10 [1] : vector<8x32xf32> to vector<8xf32>
    %14 = vector.shape_cast %13 : vector<8xf32> to vector<8x1xf32>
    %cst_11 = arith.constant 3.200000e+01 : f32
    %15 = vector.broadcast %cst_11 : f32 to vector<8x1xf32>
    %16 = arith.divf %14, %15 : vector<8x1xf32>
    %cst_12 = arith.constant 9.99999974E-6 : f32
    %17 = vector.broadcast %cst_12 : f32 to vector<8x1xf32>
    %18 = arith.addf %16, %17 : vector<8x1xf32>
    %19 = math.rsqrt %18 : vector<8x1xf32>
    %20 = vector.broadcast %19 : vector<8x1xf32> to vector<8x32xf32>
    %21 = arith.mulf %11, %20 : vector<8x32xf32>
    %22 = vector.broadcast %4 : vector<1x32xf32> to vector<8x32xf32>
    %23 = arith.mulf %21, %22 : vector<8x32xf32>
    %24 = vector.broadcast %5 : vector<1x32xf32> to vector<8x32xf32>
    %25 = arith.addf %23, %24 : vector<8x32xf32>
    %c0_13 = arith.constant 0 : index
    %c0_14 = arith.constant 0 : index
    %26 = vector.load %arg6[%c0_13, %c0_14] : memref<1x32xf32, #tpu.memory_space<vmem>>, vector<1x32xf32>
    %c0_15 = arith.constant 0 : index
    %c0_16 = arith.constant 0 : index
    %27 = vector.load %arg7[%c0_15, %c0_16] : memref<1x32xf32, #tpu.memory_space<vmem>>, vector<1x32xf32>
    %cst_17 = arith.constant dense<0.000000e+00> : vector<16xf32>
    %28 = vector.multi_reduction <add>, %3, %cst_17 [1] : vector<16x32xf32> to vector<16xf32>
    %29 = vector.shape_cast %28 : vector<16xf32> to vector<16x1xf32>
    %cst_18 = arith.constant 3.200000e+01 : f32
    %30 = vector.broadcast %cst_18 : f32 to vector<16x1xf32>
    %31 = arith.divf %29, %30 : vector<16x1xf32>
    %32 = vector.broadcast %31 : vector<16x1xf32> to vector<16x32xf32>
    %33 = arith.subf %3, %32 : vector<16x32xf32>
    %34 = arith.mulf %33, %33 : vector<16x32xf32>
    %cst_19 = arith.constant dense<0.000000e+00> : vector<16xf32>
    %35 = vector.multi_reduction <add>, %34, %cst_19 [1] : vector<16x32xf32> to vector<16xf32>
    %36 = vector.shape_cast %35 : vector<16xf32> to vector<16x1xf32>
    %cst_20 = arith.constant 3.200000e+01 : f32
    %37 = vector.broadcast %cst_20 : f32 to vector<16x1xf32>
    %38 = arith.divf %36, %37 : vector<16x1xf32>
    %cst_21 = arith.constant 9.99999974E-6 : f32
    %39 = vector.broadcast %cst_21 : f32 to vector<16x1xf32>
    %40 = arith.addf %38, %39 : vector<16x1xf32>
    %41 = math.rsqrt %40 : vector<16x1xf32>
    %42 = vector.broadcast %41 : vector<16x1xf32> to vector<16x32xf32>
    %43 = arith.mulf %33, %42 : vector<16x32xf32>
    %44 = vector.broadcast %26 : vector<1x32xf32> to vector<16x32xf32>
    %45 = arith.mulf %43, %44 : vector<16x32xf32>
    %46 = vector.broadcast %27 : vector<1x32xf32> to vector<16x32xf32>
    %47 = arith.addf %45, %46 : vector<16x32xf32>
    %48 = arith.truncf %25 : vector<8x32xf32> to vector<8x32xbf16>
    %c0_22 = arith.constant 0 : index
    %c0_23 = arith.constant 0 : index
    %49 = vector.load %arg8[%c0_22, %c0_23] : memref<32x32xbf16, #tpu.memory_space<vmem>>, vector<32x32xbf16>
    %cst_24 = arith.constant dense<0.000000e+00> : vector<8x32xf32>
    %50 = tpu.matmul %48, %49, %cst_24 {dimension_numbers = #tpu.dot_dimension_numbers<[1], [0], [0], [1], [0, 0, 1, 1], [], []>} : vector<8x32xbf16>, vector<32x32xbf16>, vector<8x32xf32> -> vector<8x32xf32>
    %51 = arith.truncf %47 : vector<16x32xf32> to vector<16x32xbf16>
    %c0_25 = arith.constant 0 : index
    %c0_26 = arith.constant 0 : index
    %52 = vector.load %arg9[%c0_25, %c0_26] : memref<32x64xbf16, #tpu.memory_space<vmem>>, vector<32x64xbf16>
    %cst_27 = arith.constant dense<0.000000e+00> : vector<16x64xf32>
    %53 = tpu.matmul %51, %52, %cst_27 {dimension_numbers = #tpu.dot_dimension_numbers<[1], [0], [0], [1], [0, 0, 1, 1], [], []>} : vector<16x32xbf16>, vector<32x64xbf16>, vector<16x64xf32> -> vector<16x64xf32>
    %54 = vector.extract_strided_slice %50 {offsets = [0, 0], sizes = [8, 8], strides = [1, 1]} : vector<8x32xf32> to vector<8x8xf32>
    %55 = arith.truncf %54 : vector<8x8xf32> to vector<8x8xbf16>
    %56 = vector.extract_strided_slice %53 {offsets = [0, 0], sizes = [16, 8], strides = [1, 1]} : vector<16x64xf32> to vector<16x8xf32>
    %57 = arith.truncf %56 : vector<16x8xf32> to vector<16x8xbf16>
    %58 = vector.extract_strided_slice %53 {offsets = [0, 32], sizes = [16, 8], strides = [1, 1]} : vector<16x64xf32> to vector<16x8xf32>
    %cst_28 = arith.constant dense<0.000000e+00> : vector<8x16xf32>
    %59 = tpu.matmul %55, %57, %cst_28 {dimension_numbers = #tpu.dot_dimension_numbers<[1], [1], [0], [0], [0, 0, 1, 0], [], []>} : vector<8x8xbf16>, vector<16x8xbf16>, vector<8x16xf32> -> vector<8x16xf32>
    %cst_29 = arith.constant dense<0xFF800000> : vector<8xf32>
    %60 = vector.multi_reduction <maximumf>, %59, %cst_29 [1] : vector<8x16xf32> to vector<8xf32>
    %61 = vector.shape_cast %60 : vector<8xf32> to vector<8x1xf32>
    %62 = vector.broadcast %61 : vector<8x1xf32> to vector<8x16xf32>
    %63 = arith.subf %59, %62 : vector<8x16xf32>
    %64 = math.exp %63 : vector<8x16xf32>
    %cst_30 = arith.constant dense<0.000000e+00> : vector<8xf32>
    %65 = vector.multi_reduction <add>, %64, %cst_30 [1] : vector<8x16xf32> to vector<8xf32>
    %66 = vector.shape_cast %65 : vector<8xf32> to vector<8x1xf32>
    %67 = tpu.reciprocal %66 {approx = true} : vector<8x1xf32> -> vector<8x1xf32>
    %68 = vector.broadcast %67 : vector<8x1xf32> to vector<8x16xf32>
    %69 = arith.mulf %64, %68 : vector<8x16xf32>
    %70 = arith.truncf %69 : vector<8x16xf32> to vector<8x16xbf16>
    %71 = arith.truncf %58 : vector<16x8xf32> to vector<16x8xbf16>
    %cst_31 = arith.constant dense<0.000000e+00> : vector<8x8xf32>
    %72 = tpu.matmul %70, %71, %cst_31 {dimension_numbers = #tpu.dot_dimension_numbers<[1], [0], [0], [1], [0, 0, 1, 1], [], []>} : vector<8x16xbf16>, vector<16x8xbf16>, vector<8x8xf32> -> vector<8x8xf32>
    %c0_32 = arith.constant 0 : index
    %c0_33 = arith.constant 0 : index
    %73 = vector.load %arg19[%c0_32, %c0_33] : memref<8x32xf32, #tpu.memory_space<vmem>>, vector<8x8xf32>
    tpu.vector_store %arg19[%c0_32, %c0_33], %72 {strides = array<i32>} : memref<8x32xf32, #tpu.memory_space<vmem>>, vector<8x8xf32>,
    %74 = vector.extract_strided_slice %50 {offsets = [0, 8], sizes = [8, 8], strides = [1, 1]} : vector<8x32xf32> to vector<8x8xf32>
    %75 = arith.truncf %74 : vector<8x8xf32> to vector<8x8xbf16>
    %76 = vector.extract_strided_slice %53 {offsets = [0, 8], sizes = [16, 8], strides = [1, 1]} : vector<16x64xf32> to vector<16x8xf32>
    %77 = arith.truncf %76 : vector<16x8xf32> to vector<16x8xbf16>
    %78 = vector.extract_strided_slice %53 {offsets = [0, 40], sizes = [16, 8], strides = [1, 1]} : vector<16x64xf32> to vector<16x8xf32>
    %cst_34 = arith.constant dense<0.000000e+00> : vector<8x16xf32>
    %79 = tpu.matmul %75, %77, %cst_34 {dimension_numbers = #tpu.dot_dimension_numbers<[1], [1], [0], [0], [0, 0, 1, 0], [], []>} : vector<8x8xbf16>, vector<16x8xbf16>, vector<8x16xf32> -> vector<8x16xf32>
    %cst_35 = arith.constant dense<0xFF800000> : vector<8xf32>
    %80 = vector.multi_reduction <maximumf>, %79, %cst_35 [1] : vector<8x16xf32> to vector<8xf32>
    %81 = vector.shape_cast %80 : vector<8xf32> to vector<8x1xf32>
    %82 = vector.broadcast %81 : vector<8x1xf32> to vector<8x16xf32>
    %83 = arith.subf %79, %82 : vector<8x16xf32>
    %84 = math.exp %83 : vector<8x16xf32>
    %cst_36 = arith.constant dense<0.000000e+00> : vector<8xf32>
    %85 = vector.multi_reduction <add>, %84, %cst_36 [1] : vector<8x16xf32> to vector<8xf32>
    %86 = vector.shape_cast %85 : vector<8xf32> to vector<8x1xf32>
    %87 = tpu.reciprocal %86 {approx = true} : vector<8x1xf32> -> vector<8x1xf32>
    %88 = vector.broadcast %87 : vector<8x1xf32> to vector<8x16xf32>
    %89 = arith.mulf %84, %88 : vector<8x16xf32>
    %90 = arith.truncf %89 : vector<8x16xf32> to vector<8x16xbf16>
    %91 = arith.truncf %78 : vector<16x8xf32> to vector<16x8xbf16>
    %cst_37 = arith.constant dense<0.000000e+00> : vector<8x8xf32>
    %92 = tpu.matmul %90, %91, %cst_37 {dimension_numbers = #tpu.dot_dimension_numbers<[1], [0], [0], [1], [0, 0, 1, 1], [], []>} : vector<8x16xbf16>, vector<16x8xbf16>, vector<8x8xf32> -> vector<8x8xf32>
    %c0_38 = arith.constant 0 : index
    %c8 = arith.constant 8 : index
    %93 = vector.load %arg19[%c0_38, %c8] : memref<8x32xf32, #tpu.memory_space<vmem>>, vector<8x8xf32>
    tpu.vector_store %arg19[%c0_38, %c8], %92 {strides = array<i32>} : memref<8x32xf32, #tpu.memory_space<vmem>>, vector<8x8xf32>,
    %94 = vector.extract_strided_slice %50 {offsets = [0, 16], sizes = [8, 8], strides = [1, 1]} : vector<8x32xf32> to vector<8x8xf32>
    %95 = arith.truncf %94 : vector<8x8xf32> to vector<8x8xbf16>
    %96 = vector.extract_strided_slice %53 {offsets = [0, 16], sizes = [16, 8], strides = [1, 1]} : vector<16x64xf32> to vector<16x8xf32>
    %97 = arith.truncf %96 : vector<16x8xf32> to vector<16x8xbf16>
    %98 = vector.extract_strided_slice %53 {offsets = [0, 48], sizes = [16, 8], strides = [1, 1]} : vector<16x64xf32> to vector<16x8xf32>
    %cst_39 = arith.constant dense<0.000000e+00> : vector<8x16xf32>
    %99 = tpu.matmul %95, %97, %cst_39 {dimension_numbers = #tpu.dot_dimension_numbers<[1], [1], [0], [0], [0, 0, 1, 0], [], []>} : vector<8x8xbf16>, vector<16x8xbf16>, vector<8x16xf32> -> vector<8x16xf32>
    %cst_40 = arith.constant dense<0xFF800000> : vector<8xf32>
    %100 = vector.multi_reduction <maximumf>, %99, %cst_40 [1] : vector<8x16xf32> to vector<8xf32>
    %101 = vector.shape_cast %100 : vector<8xf32> to vector<8x1xf32>
    %102 = vector.broadcast %101 : vector<8x1xf32> to vector<8x16xf32>
    %103 = arith.subf %99, %102 : vector<8x16xf32>
    %104 = math.exp %103 : vector<8x16xf32>
    %cst_41 = arith.constant dense<0.000000e+00> : vector<8xf32>
    %105 = vector.multi_reduction <add>, %104, %cst_41 [1] : vector<8x16xf32> to vector<8xf32>
    %106 = vector.shape_cast %105 : vector<8xf32> to vector<8x1xf32>
    %107 = tpu.reciprocal %106 {approx = true} : vector<8x1xf32> -> vector<8x1xf32>
    %108 = vector.broadcast %107 : vector<8x1xf32> to vector<8x16xf32>
    %109 = arith.mulf %104, %108 : vector<8x16xf32>
    %110 = arith.truncf %109 : vector<8x16xf32> to vector<8x16xbf16>
    %111 = arith.truncf %98 : vector<16x8xf32> to vector<16x8xbf16>
    %cst_42 = arith.constant dense<0.000000e+00> : vector<8x8xf32>
    %112 = tpu.matmul %110, %111, %cst_42 {dimension_numbers = #tpu.dot_dimension_numbers<[1], [0], [0], [1], [0, 0, 1, 1], [], []>} : vector<8x16xbf16>, vector<16x8xbf16>, vector<8x8xf32> -> vector<8x8xf32>
    %c0_43 = arith.constant 0 : index
    %c16 = arith.constant 16 : index
    %113 = vector.load %arg19[%c0_43, %c16] : memref<8x32xf32, #tpu.memory_space<vmem>>, vector<8x8xf32>
    tpu.vector_store %arg19[%c0_43, %c16], %112 {strides = array<i32>} : memref<8x32xf32, #tpu.memory_space<vmem>>, vector<8x8xf32>,
    %114 = vector.extract_strided_slice %50 {offsets = [0, 24], sizes = [8, 8], strides = [1, 1]} : vector<8x32xf32> to vector<8x8xf32>
    %115 = arith.truncf %114 : vector<8x8xf32> to vector<8x8xbf16>
    %116 = vector.extract_strided_slice %53 {offsets = [0, 24], sizes = [16, 8], strides = [1, 1]} : vector<16x64xf32> to vector<16x8xf32>
    %117 = arith.truncf %116 : vector<16x8xf32> to vector<16x8xbf16>
    %118 = vector.extract_strided_slice %53 {offsets = [0, 56], sizes = [16, 8], strides = [1, 1]} : vector<16x64xf32> to vector<16x8xf32>
    %cst_44 = arith.constant dense<0.000000e+00> : vector<8x16xf32>
    %119 = tpu.matmul %115, %117, %cst_44 {dimension_numbers = #tpu.dot_dimension_numbers<[1], [1], [0], [0], [0, 0, 1, 0], [], []>} : vector<8x8xbf16>, vector<16x8xbf16>, vector<8x16xf32> -> vector<8x16xf32>
    %cst_45 = arith.constant dense<0xFF800000> : vector<8xf32>
    %120 = vector.multi_reduction <maximumf>, %119, %cst_45 [1] : vector<8x16xf32> to vector<8xf32>
    %121 = vector.shape_cast %120 : vector<8xf32> to vector<8x1xf32>
    %122 = vector.broadcast %121 : vector<8x1xf32> to vector<8x16xf32>
    %123 = arith.subf %119, %122 : vector<8x16xf32>
    %124 = math.exp %123 : vector<8x16xf32>
    %cst_46 = arith.constant dense<0.000000e+00> : vector<8xf32>
    %125 = vector.multi_reduction <add>, %124, %cst_46 [1] : vector<8x16xf32> to vector<8xf32>
    %126 = vector.shape_cast %125 : vector<8xf32> to vector<8x1xf32>
    %127 = tpu.reciprocal %126 {approx = true} : vector<8x1xf32> -> vector<8x1xf32>
    %128 = vector.broadcast %127 : vector<8x1xf32> to vector<8x16xf32>
    %129 = arith.mulf %124, %128 : vector<8x16xf32>
    %130 = arith.truncf %129 : vector<8x16xf32> to vector<8x16xbf16>
    %131 = arith.truncf %118 : vector<16x8xf32> to vector<16x8xbf16>
    %cst_47 = arith.constant dense<0.000000e+00> : vector<8x8xf32>
    %132 = tpu.matmul %130, %131, %cst_47 {dimension_numbers = #tpu.dot_dimension_numbers<[1], [0], [0], [1], [0, 0, 1, 1], [], []>} : vector<8x16xbf16>, vector<16x8xbf16>, vector<8x8xf32> -> vector<8x8xf32>
    %c0_48 = arith.constant 0 : index
    %c24 = arith.constant 24 : index
    %133 = vector.load %arg19[%c0_48, %c24] : memref<8x32xf32, #tpu.memory_space<vmem>>, vector<8x8xf32>
    tpu.vector_store %arg19[%c0_48, %c24], %132 {strides = array<i32>} : memref<8x32xf32, #tpu.memory_space<vmem>>, vector<8x8xf32>,
    %c0_49 = arith.constant 0 : index
    %c0_50 = arith.constant 0 : index
    %134 = vector.load %arg19[%c0_49, %c0_50] : memref<8x32xf32, #tpu.memory_space<vmem>>, vector<8x32xf32>
    %135 = arith.truncf %134 : vector<8x32xf32> to vector<8x32xbf16>
    %c0_51 = arith.constant 0 : index
    %c0_52 = arith.constant 0 : index
    %136 = vector.load %arg10[%c0_51, %c0_52] : memref<32x32xbf16, #tpu.memory_space<vmem>>, vector<32x32xbf16>
    %cst_53 = arith.constant dense<0.000000e+00> : vector<8x32xf32>
    %137 = tpu.matmul %135, %136, %cst_53 {dimension_numbers = #tpu.dot_dimension_numbers<[1], [0], [0], [1], [0, 0, 1, 1], [], []>} : vector<8x32xbf16>, vector<32x32xbf16>, vector<8x32xf32> -> vector<8x32xf32>
    %c0_54 = arith.constant 0 : index
    %c0_55 = arith.constant 0 : index
    %138 = vector.load %arg11[%c0_54, %c0_55] : memref<1x32xf32, #tpu.memory_space<vmem>>, vector<1x32xf32>
    %139 = vector.broadcast %138 : vector<1x32xf32> to vector<8x32xf32>
    %140 = arith.addf %137, %139 : vector<8x32xf32>
    %141 = arith.addf %1, %140 : vector<8x32xf32>
    %c0_56 = arith.constant 0 : index
    %c0_57 = arith.constant 0 : index
    %142 = vector.load %arg12[%c0_56, %c0_57] : memref<1x32xf32, #tpu.memory_space<vmem>>, vector<1x32xf32>
    %c0_58 = arith.constant 0 : index
    %c0_59 = arith.constant 0 : index
    %143 = vector.load %arg13[%c0_58, %c0_59] : memref<1x32xf32, #tpu.memory_space<vmem>>, vector<1x32xf32>
    %cst_60 = arith.constant dense<0.000000e+00> : vector<8xf32>
    %144 = vector.multi_reduction <add>, %141, %cst_60 [1] : vector<8x32xf32> to vector<8xf32>
    %145 = vector.shape_cast %144 : vector<8xf32> to vector<8x1xf32>
    %cst_61 = arith.constant 3.200000e+01 : f32
    %146 = vector.broadcast %cst_61 : f32 to vector<8x1xf32>
    %147 = arith.divf %145, %146 : vector<8x1xf32>
    %148 = vector.broadcast %147 : vector<8x1xf32> to vector<8x32xf32>
    %149 = arith.subf %141, %148 : vector<8x32xf32>
    %150 = arith.mulf %149, %149 : vector<8x32xf32>
    %cst_62 = arith.constant dense<0.000000e+00> : vector<8xf32>
    %151 = vector.multi_reduction <add>, %150, %cst_62 [1] : vector<8x32xf32> to vector<8xf32>
    %152 = vector.shape_cast %151 : vector<8xf32> to vector<8x1xf32>
    %cst_63 = arith.constant 3.200000e+01 : f32
    %153 = vector.broadcast %cst_63 : f32 to vector<8x1xf32>
    %154 = arith.divf %152, %153 : vector<8x1xf32>
    %cst_64 = arith.constant 9.99999974E-6 : f32
    %155 = vector.broadcast %cst_64 : f32 to vector<8x1xf32>
    %156 = arith.addf %154, %155 : vector<8x1xf32>
    %157 = math.rsqrt %156 : vector<8x1xf32>
    %158 = vector.broadcast %157 : vector<8x1xf32> to vector<8x32xf32>
    %159 = arith.mulf %149, %158 : vector<8x32xf32>
    %160 = vector.broadcast %142 : vector<1x32xf32> to vector<8x32xf32>
    %161 = arith.mulf %159, %160 : vector<8x32xf32>
    %162 = vector.broadcast %143 : vector<1x32xf32> to vector<8x32xf32>
    %163 = arith.addf %161, %162 : vector<8x32xf32>
    %164 = arith.truncf %163 : vector<8x32xf32> to vector<8x32xbf16>
    %c0_65 = arith.constant 0 : index
    %c0_66 = arith.constant 0 : index
    %165 = vector.load %arg14[%c0_65, %c0_66] : memref<32x128xbf16, #tpu.memory_space<vmem>>, vector<32x128xbf16>
    %cst_67 = arith.constant dense<0.000000e+00> : vector<8x128xf32>
    %166 = tpu.matmul %164, %165, %cst_67 {dimension_numbers = #tpu.dot_dimension_numbers<[1], [0], [0], [1], [0, 0, 1, 1], [], []>} : vector<8x32xbf16>, vector<32x128xbf16>, vector<8x128xf32> -> vector<8x128xf32>
    %c0_68 = arith.constant 0 : index
    %c0_69 = arith.constant 0 : index
    %167 = vector.load %arg15[%c0_68, %c0_69] : memref<1x128xf32, #tpu.memory_space<vmem>>, vector<1x128xf32>
    %168 = vector.broadcast %167 : vector<1x128xf32> to vector<8x128xf32>
    %169 = arith.addf %166, %168 : vector<8x128xf32>
    %cst_70 = arith.constant 5.000000e-01 : f32
    %170 = vector.broadcast %cst_70 : f32 to vector<8x128xf32>
    %171 = arith.mulf %170, %169 : vector<8x128xf32>
    %cst_71 = arith.constant 4.471500e-02 : f32
    %172 = vector.broadcast %cst_71 : f32 to vector<8x128xf32>
    %173 = arith.mulf %172, %169 : vector<8x128xf32>
    %174 = arith.mulf %173, %169 : vector<8x128xf32>
    %175 = arith.mulf %174, %169 : vector<8x128xf32>
    %176 = arith.addf %169, %175 : vector<8x128xf32>
    %cst_72 = arith.constant 0.797884583 : f32
    %177 = vector.broadcast %cst_72 : f32 to vector<8x128xf32>
    %178 = arith.mulf %177, %176 : vector<8x128xf32>
    %179 = math.tanh %178 : vector<8x128xf32>
    %cst_73 = arith.constant 1.000000e+00 : f32
    %180 = vector.broadcast %cst_73 : f32 to vector<8x128xf32>
    %181 = arith.addf %180, %179 : vector<8x128xf32>
    %182 = arith.mulf %171, %181 : vector<8x128xf32>
    %183 = arith.truncf %182 : vector<8x128xf32> to vector<8x128xbf16>
    %c0_74 = arith.constant 0 : index
    %c0_75 = arith.constant 0 : index
    %184 = vector.load %arg16[%c0_74, %c0_75] : memref<128x32xbf16, #tpu.memory_space<vmem>>, vector<128x32xbf16>
    %cst_76 = arith.constant dense<0.000000e+00> : vector<8x32xf32>
    %185 = tpu.matmul %183, %184, %cst_76 {dimension_numbers = #tpu.dot_dimension_numbers<[1], [0], [0], [1], [0, 0, 1, 1], [], []>} : vector<8x128xbf16>, vector<128x32xbf16>, vector<8x32xf32> -> vector<8x32xf32>
    %c0_77 = arith.constant 0 : index
    %c0_78 = arith.constant 0 : index
    %186 = vector.load %arg17[%c0_77, %c0_78] : memref<1x32xf32, #tpu.memory_space<vmem>>, vector<1x32xf32>
    %187 = vector.broadcast %186 : vector<1x32xf32> to vector<8x32xf32>
    %188 = arith.addf %185, %187 : vector<8x32xf32>
    %189 = arith.addf %141, %188 : vector<8x32xf32>
    %c0_79 = arith.constant 0 : index
    %c0_80 = arith.constant 0 : index
    %c0_81 = arith.constant 0 : index
    %190 = vector.load %arg18[%c0_79, %c0_80, %c0_81] : memref<1x8x32xf32, #tpu.memory_space<vmem>>, vector<1x8x32xf32>
    %191 = vector.shape_cast %190 : vector<1x8x32xf32> to vector<8x32xf32>
    %192 = vector.shape_cast %189 : vector<8x32xf32> to vector<1x8x32xf32>
    tpu.vector_store %arg18[%c0_79, %c0_80, %c0_81], %192 {strides = array<i32>} : memref<1x8x32xf32, #tpu.memory_space<vmem>>, vector<1x8x32xf32>,
    return
  }
  func.func @transform_0(%arg0: i32, %arg1: i32) -> (i32, i32, i32) {
    %c0_i32 = arith.constant 0 : i32
    %c0_i32_0 = arith.constant 0 : i32
    return %arg0, %arg1, %c0_i32 : i32, i32, i32
  }
  func.func @transform_1(%arg0: i32, %arg1: i32) -> (i32, i32, i32) {
    %c0_i32 = arith.constant 0 : i32
    %c0_i32_0 = arith.constant 0 : i32
    %c0_i32_1 = arith.constant 0 : i32
    return %arg0, %c0_i32, %c0_i32_0 : i32, i32, i32
  }
  func.func @transform_2(%arg0: i32, %arg1: i32) -> (i32, i32) {
    %c0_i32 = arith.constant 0 : i32
    %c0_i32_0 = arith.constant 0 : i32
    %c0_i32_1 = arith.constant 0 : i32
    return %c0_i32, %c0_i32_0 : i32, i32
  }
  func.func @transform_3(%arg0: i32, %arg1: i32) -> (i32, i32) {
    %c0_i32 = arith.constant 0 : i32
    %c0_i32_0 = arith.constant 0 : i32
    %c0_i32_1 = arith.constant 0 : i32
    return %c0_i32, %c0_i32_0 : i32, i32
  }
  func.func @transform_4(%arg0: i32, %arg1: i32) -> (i32, i32) {
    %c0_i32 = arith.constant 0 : i32
    %c0_i32_0 = arith.constant 0 : i32
    %c0_i32_1 = arith.constant 0 : i32
    return %c0_i32, %c0_i32_0 : i32, i32
  }
  func.func @transform_5(%arg0: i32, %arg1: i32) -> (i32, i32) {
    %c0_i32 = arith.constant 0 : i32
    %c0_i32_0 = arith.constant 0 : i32
    %c0_i32_1 = arith.constant 0 : i32
    return %c0_i32, %c0_i32_0 : i32, i32
  }
  func.func @transform_6(%arg0: i32, %arg1: i32) -> (i32, i32) {
    %c0_i32 = arith.constant 0 : i32
    %c0_i32_0 = arith.constant 0 : i32
    %c0_i32_1 = arith.constant 0 : i32
    return %c0_i32, %c0_i32_0 : i32, i32
  }
  func.func @transform_7(%arg0: i32, %arg1: i32) -> (i32, i32) {
    %c0_i32 = arith.constant 0 : i32
    %c0_i32_0 = arith.constant 0 : i32
    %c0_i32_1 = arith.constant 0 : i32
    return %c0_i32, %c0_i32_0 : i32, i32
  }
  func.func @transform_8(%arg0: i32, %arg1: i32) -> (i32, i32) {
    %c0_i32 = arith.constant 0 : i32
    %c0_i32_0 = arith.constant 0 : i32
    %c0_i32_1 = arith.constant 0 : i32
    return %c0_i32, %c0_i32_0 : i32, i32
  }
  func.func @transform_9(%arg0: i32, %arg1: i32) -> (i32, i32) {
    %c0_i32 = arith.constant 0 : i32
    %c0_i32_0 = arith.constant 0 : i32
    %c0_i32_1 = arith.constant 0 : i32
    return %c0_i32, %c0_i32_0 : i32, i32
  }
  func.func @transform_10(%arg0: i32, %arg1: i32) -> (i32, i32) {
    %c0_i32 = arith.constant 0 : i32
    %c0_i32_0 = arith.constant 0 : i32
    %c0_i32_1 = arith.constant 0 : i32
    return %c0_i32, %c0_i32_0 : i32, i32
  }
  func.func @transform_11(%arg0: i32, %arg1: i32) -> (i32, i32) {
    %c0_i32 = arith.constant 0 : i32
    %c0_i32_0 = arith.constant 0 : i32
    %c0_i32_1 = arith.constant 0 : i32
    return %c0_i32, %c0_i32_0 : i32, i32
  }
  func.func @transform_12(%arg0: i32, %arg1: i32) -> (i32, i32) {
    %c0_i32 = arith.constant 0 : i32
    %c0_i32_0 = arith.constant 0 : i32
    %c0_i32_1 = arith.constant 0 : i32
    return %c0_i32, %c0_i32_0 : i32, i32
  }
  func.func @transform_13(%arg0: i32, %arg1: i32) -> (i32, i32) {
    %c0_i32 = arith.constant 0 : i32
    %c0_i32_0 = arith.constant 0 : i32
    %c0_i32_1 = arith.constant 0 : i32
    return %c0_i32, %c0_i32_0 : i32, i32
  }
  func.func @transform_14(%arg0: i32, %arg1: i32) -> (i32, i32) {
    %c0_i32 = arith.constant 0 : i32
    %c0_i32_0 = arith.constant 0 : i32
    %c0_i32_1 = arith.constant 0 : i32
    return %c0_i32, %c0_i32_0 : i32, i32
  }
  func.func @transform_15(%arg0: i32, %arg1: i32) -> (i32, i32) {
    %c0_i32 = arith.constant 0 : i32
    %c0_i32_0 = arith.constant 0 : i32
    %c0_i32_1 = arith.constant 0 : i32
    return %c0_i32, %c0_i32_0 : i32, i32
  }
  func.func @transform_16(%arg0: i32, %arg1: i32) -> (i32, i32, i32) {
    %c0_i32 = arith.constant 0 : i32
    %c0_i32_0 = arith.constant 0 : i32
    return %arg0, %arg1, %c0_i32 : i32, i32, i32
  }
}

</mosaic_0001>

<llo_original>
// kernel: tpu_custom_call.1
$region0: #{tpu_custom_call.1}
  #allocation0 [shape = 'u32[]', space=smem, size = 0x4, offset = 0x4, fixed_abs, tag = 'smem constant byte address 0x4 - core index']
  #allocation1 [shape = 'u32[144,128]{1,0:T(1,128)}', space=vmem, size = 0x12000, scoped, tag = 'internal scratch']
  #allocation2 [shape = 'f32[8,32]{1,0:T(8,128)}', space=vmem, size = 0x1000, scoped, tag = 'scratch operand']
  %s0 = inlined_call_operand.vmem [shape: f32[2,16,32], index: 0, kind: input, shape index: {}]
  %s1 = inlined_call_operand.vmem [shape: f32[2,16,32], index: 1, kind: input, shape index: {}]
  %s2 = inlined_call_operand.vmem [shape: f32[1,32], index: 2, kind: input, shape index: {}]
  %s3 = inlined_call_operand.vmem [shape: f32[1,32], index: 3, kind: input, shape index: {}]
  %s4 = inlined_call_operand.hbm [shape: f32[1,32], index: 4, kind: input, shape index: {}]
  %s5 = inlined_call_operand.hbm [shape: f32[1,32], index: 5, kind: input, shape index: {}]
  %s6 = inlined_call_operand.vmem [shape: bf16[32,32], index: 6, kind: input, shape index: {}]
  %s7 = inlined_call_operand.hbm [shape: bf16[32,64], index: 7, kind: input, shape index: {}]
  %s8 = inlined_call_operand.hbm [shape: bf16[32,32], index: 8, kind: input, shape index: {}]
  %s9 = inlined_call_operand.hbm [shape: f32[1,32], index: 9, kind: input, shape index: {}]
  %s10 = inlined_call_operand.vmem [shape: f32[1,32], index: 10, kind: input, shape index: {}]
  %s11 = inlined_call_operand.vmem [shape: f32[1,32], index: 11, kind: input, shape index: {}]
  %s12 = inlined_call_operand.vmem [shape: bf16[32,128], index: 12, kind: input, shape index: {}]
  %s13 = inlined_call_operand.vmem [shape: f32[1,128], index: 13, kind: input, shape index: {}]
  %s14 = inlined_call_operand.vmem [shape: bf16[128,32], index: 14, kind: input, shape index: {}]
  %s15 = inlined_call_operand.vmem [shape: f32[1,32], index: 15, kind: input, shape index: {}]
  %s16 = inlined_call_operand.hbm [shape: f32[2,16,32], index: 16, kind: output, shape index: {}]
  %s17 = sld [smem:[#allocation0]]
  $region117: #{tpu_custom_call.1} parent=0
    _
  %s19 = ssub.s32 1, %s17
  %s20 = scalar_select 0, %s19, %s17
  $region1: #{tpu_custom_call.1} parent=0
    #allocation3 [shape = 'u8[512]{0}', space=vmem, size = 0x400, scoped, tag = 'input window, operand 4, single buffered']
    #allocation4 [shape = 's32[2]{0}', space=sflag, size = 0x8, scoped, tag = 'scoped memory for tpu_custom_call.1']
    #allocation5 [shape = 's32[2]{0}', space=sflag, size = 0x8, scoped, tag = 'scoped memory for tpu_custom_call.1']
    #allocation6 [shape = 'u8[512]{0}', space=vmem, size = 0x400, scoped, tag = 'input window, operand 5, single buffered']
    #allocation7 [shape = 's32[1]{0}', space=sflag, size = 0x4, scoped, tag = 'scoped memory for tpu_custom_call.1']
    #allocation8 [shape = 'u8[8192]{0}', space=vmem, size = 0x2000, scoped, tag = 'input window, operand 7, single buffered']
    #allocation9 [shape = 'u8[8192]{0}', space=vmem, size = 0x2000, scoped, tag = 'input window, operand 8, single buffered']
    #allocation10 [shape = 's32[1]{0}', space=sflag, size = 0x4, scoped, tag = 'scoped memory for tpu_custom_call.1']
    #allocation11 [shape = 'u8[512]{0}', space=vmem, size = 0x400, scoped, tag = 'input window, operand 9, single buffered']
    #allocation12 [shape = 'u8[8192]{0}', space=vmem, size = 0x2000, scoped, tag = 'output window, operand 0']
    %21 = vsyncpa [#allocation4], 0
    %22 = vsyncpa [#allocation7], 0
    %23 = vsyncpa [#allocation10], 0
    %24 = vsyncpa [#allocation5], 0
    %s25 = scalar_lea.sflag [#allocation5], 1
    %26 = vsyncpa %s25, 0
    loop: start=0, step=1, limit=6
    $region2: #{tpu_custom_call.1} parent=1 // loop_pre_header
      _
    $region3: #{tpu_custom_call.1} parent=1 // loop_header
      %s28 = sphi 0, %s32
      %p29 = scmp.ge.s32.totalorder %s28, 6
      %s35 = sphi 0, %s47
      %s36 = sphi 0, %s43
      %s37 = sphi 0, %s35
      %s38 = sphi 0, %s36
      %s39 = sphi 0, %s37
      %s40 = sphi 0, %s38
      %s52 = sphi 0, %s54
      %s55 = sphi 0, %s52
      %s56 = sphi 0, %s55
      %s72 = sphi 0, %s56
      %s78 = sphi 0, %s80
      %s81 = sphi 0, %s78
      %s82 = sphi 0, %s81
      %s98 = sphi 0, %s82
      %s102 = sphi 0, %s102
      %s104 = sphi 0, %s102
      %s105 = sphi 0, %s104
      %s119 = sphi 0, %s105
      %s123 = sphi 0, %s123
      %s125 = sphi 0, %s123
      %s126 = sphi 0, %s125
      %s140 = sphi 0, %s126
      %s144 = sphi 0, %s144
      %s146 = sphi 0, %s144
      %s147 = sphi 0, %s146
      %s161 = sphi 0, %s147
      %s165 = sphi 0, %s165
      %s167 = sphi 0, %s165
      %s168 = sphi 0, %s167
      %s182 = sphi 0, %s168
      %s186 = sphi 0, %s186
      %s188 = sphi 0, %s186
      %s189 = sphi 0, %s188
      %s203 = sphi 0, %s189
      %s207 = sphi 0, %s207
      %s209 = sphi 0, %s207
      %s210 = sphi 0, %s209
      %s224 = sphi 0, %s210
      %s228 = sphi 0, %s228
      %s230 = sphi 0, %s228
      %s231 = sphi 0, %s230
      %s245 = sphi 0, %s231
      %s249 = sphi 0, %s249
      %s251 = sphi 0, %s249
      %s252 = sphi 0, %s251
      %s266 = sphi 0, %s252
      %s270 = sphi 0, %s270
      %s272 = sphi 0, %s270
      %s273 = sphi 0, %s272
      %s287 = sphi 0, %s273
      %s291 = sphi 0, %s291
      %s293 = sphi 0, %s291
      %s294 = sphi 0, %s293
      %s308 = sphi 0, %s294
      %s312 = sphi 0, %s312
      %s314 = sphi 0, %s312
      %s315 = sphi 0, %s314
      %s329 = sphi 0, %s315
      %s333 = sphi 0, %s333
      %s335 = sphi 0, %s333
      %s336 = sphi 0, %s335
      %s350 = sphi 0, %s336
      %s354 = sphi 0, %s354
      %s356 = sphi 0, %s354
      %s357 = sphi 0, %s356
      %s371 = sphi 0, %s357
      %s375 = sphi 0, %s375
      %s377 = sphi 0, %s375
      %s378 = sphi 0, %s377
      %s392 = sphi 0, %s378
      %s400 = sphi 0, %s402
      %s403 = sphi 0, %s400
      %s404 = sphi 0, %s403
      %s420 = sphi 0, %s404
    $region4: #{tpu_custom_call.1} parent=1 // loop_header_branch
      %31 = sbr.rel (%p29) target = $region8
    $region5: #{tpu_custom_call.1} parent=1 // loop_body
      %s33 = ssub.s32 %s28, 1
      %s34 = ssub.s32 %s28, 2
      %s41 = sadd.s32 1, %s36
      %p42 = scmp.ge.s32.totalorder %s41, 2
      %s43 = scalar_select %p42, 0, %s41
      %s44 = sadd.s32 1, %s35
      %s45 = scalar_select %p42, %s44, %s35
      %p46 = scmp.ge.s32.totalorder %s45, 2
      %s47 = scalar_select %p46, 0, %s45
      %s48 = ssub.s32 %s35, %s47
      %s49 = ssub.s32 %s36, %s43
      %s50 = sor.u32 %s48, %s49
      %p51 = scmp.eq.s32.totalorder %s50, 0
      %s53 = sadd.s32 %s52, 1
      %s54 = scalar_select %p51, %s52, %s53
      %p57 = pneg %p51
      %p58 = scmp.eq.s32.totalorder %s28, 3
      %p59 = por %p57, %p58
      %p60 = scmp.ne.s32.totalorder %s52, %s55
      %p61 = scmp.eq.s32.totalorder %s28, 0
      %p62 = por %p60, %p61
      %p63 = scmp.ne.s32.totalorder %s52, %s55
      %p64 = scmp.eq.s32.totalorder %s33, 3
      %p65 = por %p63, %p64
      %p66 = scmp.ne.s32.totalorder %s55, %s56
      %p67 = scmp.eq.s32.totalorder %s33, 0
      %p68 = por %p66, %p67
      %p69 = scmp.ne.s32.totalorder %s55, %s56
      %p70 = scmp.eq.s32.totalorder %s34, 3
      %p71 = por %p69, %p70
      %p73 = scmp.ne.s32.totalorder %s56, %s72
      %p74 = scmp.eq.s32.totalorder %s34, 0
      %p75 = por %p73, %p74
      %s76 = ssub.s32 %s35, %s47
      %p77 = scmp.eq.s32.totalorder %s76, 0
      %s79 = sadd.s32 %s78, 1
      %s80 = scalar_select %p77, %s78, %s79
      %p83 = pneg %p77
      %p84 = scmp.eq.s32.totalorder %s28, 3
      %p85 = por %p83, %p84
      %p86 = scmp.ne.s32.totalorder %s78, %s81
      %p87 = scmp.eq.s32.totalorder %s28, 0
      %p88 = por %p86, %p87
      %p89 = scmp.ne.s32.totalorder %s78, %s81
      %p90 = scmp.eq.s32.totalorder %s33, 3
      %p91 = por %p89, %p90
      %p92 = scmp.ne.s32.totalorder %s81, %s82
      %p93 = scmp.eq.s32.totalorder %s33, 0
      %p94 = por %p92, %p93
      %p95 = scmp.ne.s32.totalorder %s81, %s82
      %p96 = scmp.eq.s32.totalorder %s34, 3
      %p97 = por %p95, %p96
      %p99 = scmp.ne.s32.totalorder %s82, %s98
      %p100 = scmp.eq.s32.totalorder %s34, 0
      %p101 = por %p99, %p100
      %s103 = sadd.s32 %s102, 1
      %p106 = scmp.eq.s32.totalorder %s28, 3
      %p107 = scmp.ne.s32.totalorder %s102, %s104
      %p108 = scmp.eq.s32.totalorder %s28, 0
      %p109 = por %p107, %p108
      %p110 = scmp.ne.s32.totalorder %s102, %s104
      %p111 = scmp.eq.s32.totalorder %s33, 3
      %p112 = por %p110, %p111
      %p113 = scmp.ne.s32.totalorder %s104, %s105
      %p114 = scmp.eq.s32.totalorder %s33, 0
      %p115 = por %p113, %p114
      %p116 = scmp.ne.s32.totalorder %s104, %s105
      %p117 = scmp.eq.s32.totalorder %s34, 3
      %p118 = por %p116, %p117
      %p120 = scmp.ne.s32.totalorder %s105, %s119
      %p121 = scmp.eq.s32.totalorder %s34, 0
      %p122 = por %p120, %p121
      %s124 = sadd.s32 %s123, 1
      %p127 = scmp.eq.s32.totalorder %s28, 3
      %p128 = scmp.ne.s32.totalorder %s123, %s125
      %p129 = scmp.eq.s32.totalorder %s28, 0
      %p130 = por %p128, %p129
      %p131 = scmp.ne.s32.totalorder %s123, %s125
      %p132 = scmp.eq.s32.totalorder %s33, 3
      %p133 = por %p131, %p132
      %p134 = scmp.ne.s32.totalorder %s125, %s126
      %p135 = scmp.eq.s32.totalorder %s33, 0
      %p136 = por %p134, %p135
      %p137 = scmp.ne.s32.totalorder %s125, %s126
      %p138 = scmp.eq.s32.totalorder %s34, 3
      %p139 = por %p137, %p138
      %p141 = scmp.ne.s32.totalorder %s126, %s140
      %p142 = scmp.eq.s32.totalorder %s34, 0
      %p143 = por %p141, %p142
      %s145 = sadd.s32 %s144, 1
      %p148 = scmp.eq.s32.totalorder %s28, 3
      %p149 = scmp.ne.s32.totalorder %s144, %s146
      %p150 = scmp.eq.s32.totalorder %s28, 0
      %p151 = por %p149, %p150
      %p152 = scmp.ne.s32.totalorder %s144, %s146
      %p153 = scmp.eq.s32.totalorder %s33, 3
      %p154 = por %p152, %p153
      %p155 = scmp.ne.s32.totalorder %s146, %s147
      %p156 = scmp.eq.s32.totalorder %s33, 0
      %p157 = por %p155, %p156
      %p158 = scmp.ne.s32.totalorder %s146, %s147
      %p159 = scmp.eq.s32.totalorder %s34, 3
      %p160 = por %p158, %p159
      %p162 = scmp.ne.s32.totalorder %s147, %s161
      %p163 = scmp.eq.s32.totalorder %s34, 0
      %p164 = por %p162, %p163
      %s166 = sadd.s32 %s165, 1
      %p169 = scmp.eq.s32.totalorder %s28, 3
      %p170 = scmp.ne.s32.totalorder %s165, %s167
      %p171 = scmp.eq.s32.totalorder %s28, 0
      %p172 = por %p170, %p171
      %p173 = scmp.ne.s32.totalorder %s165, %s167
      %p174 = scmp.eq.s32.totalorder %s33, 3
      %p175 = por %p173, %p174
      %p176 = scmp.ne.s32.totalorder %s167, %s168
      %p177 = scmp.eq.s32.totalorder %s33, 0
      %p178 = por %p176, %p177
      %p179 = scmp.ne.s32.totalorder %s167, %s168
      %p180 = scmp.eq.s32.totalorder %s34, 3
      %p181 = por %p179, %p180
      %p183 = scmp.ne.s32.totalorder %s168, %s182
      %p184 = scmp.eq.s32.totalorder %s34, 0
      %p185 = por %p183, %p184
      %s187 = sadd.s32 %s186, 1
      %p190 = scmp.eq.s32.totalorder %s28, 3
      %p191 = scmp.ne.s32.totalorder %s186, %s188
      %p192 = scmp.eq.s32.totalorder %s28, 0
      %p193 = por %p191, %p192
      %p194 = scmp.ne.s32.totalorder %s186, %s188
      %p195 = scmp.eq.s32.totalorder %s33, 3
      %p196 = por %p194, %p195
      %p197 = scmp.ne.s32.totalorder %s188, %s189
      %p198 = scmp.eq.s32.totalorder %s33, 0
      %p199 = por %p197, %p198
      %p200 = scmp.ne.s32.totalorder %s188, %s189
      %p201 = scmp.eq.s32.totalorder %s34, 3
      %p202 = por %p200, %p201
      %p204 = scmp.ne.s32.totalorder %s189, %s203
      %p205 = scmp.eq.s32.totalorder %s34, 0
      %p206 = por %p204, %p205
      %s208 = sadd.s32 %s207, 1
      %p211 = scmp.eq.s32.totalorder %s28, 3
      %p212 = scmp.ne.s32.totalorder %s207, %s209
      %p213 = scmp.eq.s32.totalorder %s28, 0
      %p214 = por %p212, %p213
      %p215 = scmp.ne.s32.totalorder %s207, %s209
      %p216 = scmp.eq.s32.totalorder %s33, 3
      %p217 = por %p215, %p216
      %p218 = scmp.ne.s32.totalorder %s209, %s210
      %p219 = scmp.eq.s32.totalorder %s33, 0
      %p220 = por %p218, %p219
      %p221 = scmp.ne.s32.totalorder %s209, %s210
      %p222 = scmp.eq.s32.totalorder %s34, 3
      %p223 = por %p221, %p222
      %p225 = scmp.ne.s32.totalorder %s210, %s224
      %p226 = scmp.eq.s32.totalorder %s34, 0
      %p227 = por %p225, %p226
      %s229 = sadd.s32 %s228, 1
      %p232 = scmp.eq.s32.totalorder %s28, 3
      %p233 = scmp.ne.s32.totalorder %s228, %s230
      %p234 = scmp.eq.s32.totalorder %s28, 0
      %p235 = por %p233, %p234
      %p236 = scmp.ne.s32.totalorder %s228, %s230
      %p237 = scmp.eq.s32.totalorder %s33, 3
      %p238 = por %p236, %p237
      %p239 = scmp.ne.s32.totalorder %s230, %s231
      %p240 = scmp.eq.s32.totalorder %s33, 0
      %p241 = por %p239, %p240
      %p242 = scmp.ne.s32.totalorder %s230, %s231
      %p243 = scmp.eq.s32.totalorder %s34, 3
      %p244 = por %p242, %p243
      %p246 = scmp.ne.s32.totalorder %s231, %s245
      %p247 = scmp.eq.s32.totalorder %s34, 0
      %p248 = por %p246, %p247
      %s250 = sadd.s32 %s249, 1
      %p253 = scmp.eq.s32.totalorder %s28, 3
      %p254 = scmp.ne.s32.totalorder %s249, %s251
      %p255 = scmp.eq.s32.totalorder %s28, 0
      %p256 = por %p254, %p255
      %p257 = scmp.ne.s32.totalorder %s249, %s251
      %p258 = scmp.eq.s32.totalorder %s33, 3
      %p259 = por %p257, %p258
      %p260 = scmp.ne.s32.totalorder %s251, %s252
      %p261 = scmp.eq.s32.totalorder %s33, 0
      %p262 = por %p260, %p261
      %p263 = scmp.ne.s32.totalorder %s251, %s252
      %p264 = scmp.eq.s32.totalorder %s34, 3
      %p265 = por %p263, %p264
      %p267 = scmp.ne.s32.totalorder %s252, %s266
      %p268 = scmp.eq.s32.totalorder %s34, 0
      %p269 = por %p267, %p268
      %s271 = sadd.s32 %s270, 1
      %p274 = scmp.eq.s32.totalorder %s28, 3
      %p275 = scmp.ne.s32.totalorder %s270, %s272
      %p276 = scmp.eq.s32.totalorder %s28, 0
      %p277 = por %p275, %p276
      %p278 = scmp.ne.s32.totalorder %s270, %s272
      %p279 = scmp.eq.s32.totalorder %s33, 3
      %p280 = por %p278, %p279
      %p281 = scmp.ne.s32.totalorder %s272, %s273
      %p282 = scmp.eq.s32.totalorder %s33, 0
      %p283 = por %p281, %p282
      %p284 = scmp.ne.s32.totalorder %s272, %s273
      %p285 = scmp.eq.s32.totalorder %s34, 3
      %p286 = por %p284, %p285
      %p288 = scmp.ne.s32.totalorder %s273, %s287
      %p289 = scmp.eq.s32.totalorder %s34, 0
      %p290 = por %p288, %p289
      %s292 = sadd.s32 %s291, 1
      %p295 = scmp.eq.s32.totalorder %s28, 3
      %p296 = scmp.ne.s32.totalorder %s291, %s293
      %p297 = scmp.eq.s32.totalorder %s28, 0
      %p298 = por %p296, %p297
      %p299 = scmp.ne.s32.totalorder %s291, %s293
      %p300 = scmp.eq.s32.totalorder %s33, 3
      %p301 = por %p299, %p300
      %p302 = scmp.ne.s32.totalorder %s293, %s294
      %p303 = scmp.eq.s32.totalorder %s33, 0
      %p304 = por %p302, %p303
      %p305 = scmp.ne.s32.totalorder %s293, %s294
      %p306 = scmp.eq.s32.totalorder %s34, 3
      %p307 = por %p305, %p306
      %p309 = scmp.ne.s32.totalorder %s294, %s308
      %p310 = scmp.eq.s32.totalorder %s34, 0
      %p311 = por %p309, %p310
      %s313 = sadd.s32 %s312, 1
      %p316 = scmp.eq.s32.totalorder %s28, 3
      %p317 = scmp.ne.s32.totalorder %s312, %s314
      %p318 = scmp.eq.s32.totalorder %s28, 0
      %p319 = por %p317, %p318
      %p320 = scmp.ne.s32.totalorder %s312, %s314
      %p321 = scmp.eq.s32.totalorder %s33, 3
      %p322 = por %p320, %p321
      %p323 = scmp.ne.s32.totalorder %s314, %s315
      %p324 = scmp.eq.s32.totalorder %s33, 0
      %p325 = por %p323, %p324
      %p326 = scmp.ne.s32.totalorder %s314, %s315
      %p327 = scmp.eq.s32.totalorder %s34, 3
      %p328 = por %p326, %p327
      %p330 = scmp.ne.s32.totalorder %s315, %s329
      %p331 = scmp.eq.s32.totalorder %s34, 0
      %p332 = por %p330, %p331
      %s334 = sadd.s32 %s333, 1
      %p337 = scmp.eq.s32.totalorder %s28, 3
      %p338 = scmp.ne.s32.totalorder %s333, %s335
      %p339 = scmp.eq.s32.totalorder %s28, 0
      %p340 = por %p338, %p339
      %p341 = scmp.ne.s32.totalorder %s333, %s335
      %p342 = scmp.eq.s32.totalorder %s33, 3
      %p343 = por %p341, %p342
      %p344 = scmp.ne.s32.totalorder %s335, %s336
      %p345 = scmp.eq.s32.totalorder %s33, 0
      %p346 = por %p344, %p345
      %p347 = scmp.ne.s32.totalorder %s335, %s336
      %p348 = scmp.eq.s32.totalorder %s34, 3
      %p349 = por %p347, %p348
      %p351 = scmp.ne.s32.totalorder %s336, %s350
      %p352 = scmp.eq.s32.totalorder %s34, 0
      %p353 = por %p351, %p352
      %s355 = sadd.s32 %s354, 1
      %p358 = scmp.eq.s32.totalorder %s28, 3
      %p359 = scmp.ne.s32.totalorder %s354, %s356
      %p360 = scmp.eq.s32.totalorder %s28, 0
      %p361 = por %p359, %p360
      %p362 = scmp.ne.s32.totalorder %s354, %s356
      %p363 = scmp.eq.s32.totalorder %s33, 3
      %p364 = por %p362, %p363
      %p365 = scmp.ne.s32.totalorder %s356, %s357
      %p366 = scmp.eq.s32.totalorder %s33, 0
      %p367 = por %p365, %p366
      %p368 = scmp.ne.s32.totalorder %s356, %s357
      %p369 = scmp.eq.s32.totalorder %s34, 3
      %p370 = por %p368, %p369
      %p372 = scmp.ne.s32.totalorder %s357, %s371
      %p373 = scmp.eq.s32.totalorder %s34, 0
      %p374 = por %p372, %p373
      %s376 = sadd.s32 %s375, 1
      %p379 = scmp.eq.s32.totalorder %s28, 3
      %p380 = scmp.ne.s32.totalorder %s375, %s377
      %p381 = scmp.eq.s32.totalorder %s28, 0
      %p382 = por %p380, %p381
      %p383 = scmp.ne.s32.totalorder %s375, %s377
      %p384 = scmp.eq.s32.totalorder %s33, 3
      %p385 = por %p383, %p384
      %p386 = scmp.ne.s32.totalorder %s377, %s378
      %p387 = scmp.eq.s32.totalorder %s33, 0
      %p388 = por %p386, %p387
      %p389 = scmp.ne.s32.totalorder %s377, %s378
      %p390 = scmp.eq.s32.totalorder %s34, 3
      %p391 = por %p389, %p390
      %p393 = scmp.ne.s32.totalorder %s378, %s392
      %p394 = scmp.eq.s32.totalorder %s34, 0
      %p395 = por %p393, %p394
      %s396 = ssub.s32 %s35, %s47
      %s397 = ssub.s32 %s36, %s43
      %s398 = sor.u32 %s396, %s397
      %p399 = scmp.eq.s32.totalorder %s398, 0
      %s401 = sadd.s32 %s400, 1
      %s402 = scalar_select %p399, %s400, %s401
      %p405 = pneg %p399
      %p406 = scmp.eq.s32.totalorder %s28, 3
      %p407 = por %p405, %p406
      %p408 = scmp.ne.s32.totalorder %s400, %s403
      %p409 = scmp.eq.s32.totalorder %s28, 0
      %p410 = por %p408, %p409
      %p411 = scmp.ne.s32.totalorder %s400, %s403
      %p412 = scmp.eq.s32.totalorder %s33, 3
      %p413 = por %p411, %p412
      %p414 = scmp.ne.s32.totalorder %s403, %s404
      %p415 = scmp.eq.s32.totalorder %s33, 0
      %p416 = por %p414, %p415
      %p417 = scmp.ne.s32.totalorder %s403, %s404
      %p418 = scmp.eq.s32.totalorder %s34, 3
      %p419 = por %p417, %p418
      %p421 = scmp.ne.s32.totalorder %s404, %s420
      %p422 = scmp.eq.s32.totalorder %s34, 0
      %p423 = por %p421, %p422
      %p424 = scmp.le.s32.totalorder 1, %s28
      %p425 = scmp.lt.s32.totalorder %s28, 5
      %p426 = pnand %p424, %p425
      %p427 = pneg %p426
      // Predicated region
      $region9: #{tpu_custom_call.1} parent=5 // pred_check
        _
      $region10: #{tpu_custom_call.1} parent=5 // pred_check_branch
        %429 = sbr.rel (%p426) target = $region12
      $region11: #{tpu_custom_call.1} parent=5 // pred_region
        %s430 = ssub.s32 %s28, 1
        // Predicated region
        $region13: #{tpu_custom_call.1} parent=11 // pred_check
          %p431 = pneg %p115
        $region14: #{tpu_custom_call.1} parent=11 // pred_check_branch
          %433 = sbr.rel (%p431) target = $region16
        $region15: #{tpu_custom_call.1} parent=11 // pred_region
          _
        $region16: #{tpu_custom_call.1} parent=11 // pred_fallthru
          _
        // Predicated region
        $region17: #{tpu_custom_call.1} parent=11 // pred_check
          %p434 = pneg %p136
        $region18: #{tpu_custom_call.1} parent=11 // pred_check_branch
          %436 = sbr.rel (%p434) target = $region20
        $region19: #{tpu_custom_call.1} parent=11 // pred_region
          _
        $region20: #{tpu_custom_call.1} parent=11 // pred_fallthru
          _
        // Predicated region
        $region21: #{tpu_custom_call.1} parent=11 // pred_check
          %p437 = pneg %p157
        $region22: #{tpu_custom_call.1} parent=11 // pred_check_branch
          %439 = sbr.rel (%p437) target = $region24
        $region23: #{tpu_custom_call.1} parent=11 // pred_region
          %s441 = ssub.s32 16, 16
          %442 = vsyncadd [#allocation4], %s441
          %s444 = sshll.u32 [#allocation3], 4
          %s445 = int_to_ptr.vmem [resolvable:$true] %s444
          %447 = dma.hbm_to_vmem [thread:$0]  %s4, 16, %s445, [#allocation4]
        $region24: #{tpu_custom_call.1} parent=11 // pred_fallthru
          _
        // Predicated region
        $region25: #{tpu_custom_call.1} parent=11 // pred_check
          %p448 = pneg %p178
        $region26: #{tpu_custom_call.1} parent=11 // pred_check_branch
          %450 = sbr.rel (%p448) target = $region28
        $region27: #{tpu_custom_call.1} parent=11 // pred_region
          %s452 = ssub.s32 16, 16
          %453 = vsyncadd [#allocation7], %s452
          %s455 = sshll.u32 [#allocation6], 4
          %s456 = int_to_ptr.vmem [resolvable:$true] %s455
          %458 = dma.hbm_to_vmem [thread:$0]  %s5, 16, %s456, [#allocation7]
        $region28: #{tpu_custom_call.1} parent=11 // pred_fallthru
          _
        // Predicated region
        $region29: #{tpu_custom_call.1} parent=11 // pred_check
          %p459 = pneg %p199
        $region30: #{tpu_custom_call.1} parent=11 // pred_check_branch
          %461 = sbr.rel (%p459) target = $region32
        $region31: #{tpu_custom_call.1} parent=11 // pred_region
          _
        $region32: #{tpu_custom_call.1} parent=11 // pred_fallthru
          _
        // Predicated region
        $region33: #{tpu_custom_call.1} parent=11 // pred_check
          %p462 = pneg %p220
        $region34: #{tpu_custom_call.1} parent=11 // pred_check_branch
          %464 = sbr.rel (%p462) target = $region36
        $region35: #{tpu_custom_call.1} parent=11 // pred_region
          %s466 = ssub.s32 256, 256
          %467 = vsyncadd [#allocation7], %s466
          %s468 = sshll.u32 [#allocation8], 4
          %s469 = int_to_ptr.vmem [resolvable:$true] %s468
          %474 = dma.hbm_to_vmem [thread:$0]  %s7, 256, %s469, [#allocation7], 64, 64, 4
        $region36: #{tpu_custom_call.1} parent=11 // pred_fallthru
          _
        // Predicated region
        $region37: #{tpu_custom_call.1} parent=11 // pred_check
          %p475 = pneg %p241
        $region38: #{tpu_custom_call.1} parent=11 // pred_check_branch
          %477 = sbr.rel (%p475) target = $region40
        $region39: #{tpu_custom_call.1} parent=11 // pred_region
          %s479 = ssub.s32 256, 256
          %480 = vsyncadd [#allocation10], %s479
          %s481 = sshll.u32 [#allocation9], 4
          %s482 = int_to_ptr.vmem [resolvable:$true] %s481
          %487 = dma.hbm_to_vmem [thread:$0]  %s8, 256, %s482, [#allocation10], 64, 64, 4
        $region40: #{tpu_custom_call.1} parent=11 // pred_fallthru
          _
        // Predicated region
        $region41: #{tpu_custom_call.1} parent=11 // pred_check
          %p488 = pneg %p262
        $region42: #{tpu_custom_call.1} parent=11 // pred_check_branch
          %490 = sbr.rel (%p488) target = $region44
        $region43: #{tpu_custom_call.1} parent=11 // pred_region
          %s492 = ssub.s32 16, 16
          %493 = vsyncadd [#allocation10], %s492
          %s495 = sshll.u32 [#allocation11], 4
          %s496 = int_to_ptr.vmem [resolvable:$true] %s495
          %498 = dma.hbm_to_vmem [thread:$0]  %s9, 16, %s496, [#allocation10]
        $region44: #{tpu_custom_call.1} parent=11 // pred_fallthru
          _
        // Predicated region
        $region45: #{tpu_custom_call.1} parent=11 // pred_check
          %p499 = pneg %p283
        $region46: #{tpu_custom_call.1} parent=11 // pred_check_branch
          %501 = sbr.rel (%p499) target = $region48
        $region47: #{tpu_custom_call.1} parent=11 // pred_region
          _
        $region48: #{tpu_custom_call.1} parent=11 // pred_fallthru
          _
        // Predicated region
        $region49: #{tpu_custom_call.1} parent=11 // pred_check
          %p502 = pneg %p304
        $region50: #{tpu_custom_call.1} parent=11 // pred_check_branch
          %504 = sbr.rel (%p502) target = $region52
        $region51: #{tpu_custom_call.1} parent=11 // pred_region
          _
        $region52: #{tpu_custom_call.1} parent=11 // pred_fallthru
          _
        // Predicated region
        $region53: #{tpu_custom_call.1} parent=11 // pred_check
          %p505 = pneg %p325
        $region54: #{tpu_custom_call.1} parent=11 // pred_check_branch
          %507 = sbr.rel (%p505) target = $region56
        $region55: #{tpu_custom_call.1} parent=11 // pred_region
          _
        $region56: #{tpu_custom_call.1} parent=11 // pred_fallthru
          _
        // Predicated region
        $region57: #{tpu_custom_call.1} parent=11 // pred_check
          %p508 = pneg %p346
        $region58: #{tpu_custom_call.1} parent=11 // pred_check_branch
          %510 = sbr.rel (%p508) target = $region60
        $region59: #{tpu_custom_call.1} parent=11 // pred_region
          _
        $region60: #{tpu_custom_call.1} parent=11 // pred_fallthru
          _
        // Predicated region
        $region61: #{tpu_custom_call.1} parent=11 // pred_check
          %p511 = pneg %p367
        $region62: #{tpu_custom_call.1} parent=11 // pred_check_branch
          %513 = sbr.rel (%p511) target = $region64
        $region63: #{tpu_custom_call.1} parent=11 // pred_region
          _
        $region64: #{tpu_custom_call.1} parent=11 // pred_fallthru
          _
        // Predicated region
        $region65: #{tpu_custom_call.1} parent=11 // pred_check
          %p514 = pneg %p388
        $region66: #{tpu_custom_call.1} parent=11 // pred_check_branch
          %516 = sbr.rel (%p514) target = $region68
        $region67: #{tpu_custom_call.1} parent=11 // pred_region
          _
        $region68: #{tpu_custom_call.1} parent=11 // pred_fallthru
          _
      $region12: #{tpu_custom_call.1} parent=5 // pred_fallthru
        _
      %p517 = scmp.lt.s32.totalorder %s28, 4
      // Predicated region
      $region69: #{tpu_custom_call.1} parent=5 // pred_check
        %p518 = pneg %p517
      $region70: #{tpu_custom_call.1} parent=5 // pred_check_branch
        %520 = sbr.rel (%p518) target = $region72
      $region71: #{tpu_custom_call.1} parent=5 // pred_region
        // Predicated region
        $region73: #{tpu_custom_call.1} parent=71 // pred_check
          %p521 = pneg %p62
        $region74: #{tpu_custom_call.1} parent=71 // pred_check_branch
          %523 = sbr.rel (%p521) target = $region76
        $region75: #{tpu_custom_call.1} parent=71 // pred_region
          %p524 = scmp.lt.s32.totalorder %s35, 1
          %s525 = scalar_select %p524, %s35, 1
          %p526 = scmp.lt.s32.totalorder %s36, 1
          %s527 = scalar_select %p526, %s36, 1
          %s528 = smul.addr %s525, 2
          %s529 = sadd.s32 %s527, %s528
          %s530 = smul.addr %s529, 8
          %s531 = scalar_lea.vmem %s0, %s530
        $region76: #{tpu_custom_call.1} parent=71 // pred_fallthru
          _
        // Predicated region
        $region77: #{tpu_custom_call.1} parent=71 // pred_check
          %p532 = pneg %p88
        $region78: #{tpu_custom_call.1} parent=71 // pred_check_branch
          %534 = sbr.rel (%p532) target = $region80
        $region79: #{tpu_custom_call.1} parent=71 // pred_region
          %p535 = scmp.lt.s32.totalorder %s35, 1
          %s536 = scalar_select %p535, %s35, 1
          %s537 = smul.addr %s536, 2
          %s538 = smul.addr %s537, 8
          %s539 = scalar_lea.vmem %s1, %s538
        $region80: #{tpu_custom_call.1} parent=71 // pred_fallthru
          _
      $region72: #{tpu_custom_call.1} parent=5 // pred_fallthru
        _
      %p540 = scmp.le.s32.totalorder 1, %s28
      %p541 = scmp.lt.s32.totalorder %s28, 5
      %p542 = pnand %p540, %p541
      %p543 = pneg %p542
      // Predicated region
      $region81: #{tpu_custom_call.1} parent=5 // pred_check
        _
      $region82: #{tpu_custom_call.1} parent=5 // pred_check_branch
        %545 = sbr.rel (%p542) target = $region84
      $region83: #{tpu_custom_call.1} parent=5 // pred_region
        %s546 = ssub.s32 %s28, 1
        // Predicated region
        $region85: #{tpu_custom_call.1} parent=83 // pred_check
          %p547 = pneg %p157
        $region86: #{tpu_custom_call.1} parent=83 // pred_check_branch
          %549 = sbr.rel (%p547) target = $region88
        $region87: #{tpu_custom_call.1} parent=83 // pred_region
          %550 = dma.done [#allocation4], 16
        $region88: #{tpu_custom_call.1} parent=83 // pred_fallthru
          _
        // Predicated region
        $region89: #{tpu_custom_call.1} parent=83 // pred_check
          %p551 = pneg %p178
        $region90: #{tpu_custom_call.1} parent=83 // pred_check_branch
          %553 = sbr.rel (%p551) target = $region92
        $region91: #{tpu_custom_call.1} parent=83 // pred_region
          %554 = dma.done [#allocation7], 16
        $region92: #{tpu_custom_call.1} parent=83 // pred_fallthru
          _
        // Predicated region
        $region93: #{tpu_custom_call.1} parent=83 // pred_check
          %p555 = pneg %p220
        $region94: #{tpu_custom_call.1} parent=83 // pred_check_branch
          %557 = sbr.rel (%p555) target = $region96
        $region95: #{tpu_custom_call.1} parent=83 // pred_region
          %558 = dma.done [#allocation7], 256
        $region96: #{tpu_custom_call.1} parent=83 // pred_fallthru
          _
        // Predicated region
        $region97: #{tpu_custom_call.1} parent=83 // pred_check
          %p559 = pneg %p241
        $region98: #{tpu_custom_call.1} parent=83 // pred_check_branch
          %561 = sbr.rel (%p559) target = $region100
        $region99: #{tpu_custom_call.1} parent=83 // pred_region
          %562 = dma.done [#allocation10], 256
        $region100: #{tpu_custom_call.1} parent=83 // pred_fallthru
          _
        // Predicated region
        $region101: #{tpu_custom_call.1} parent=83 // pred_check
          %p563 = pneg %p262
        $region102: #{tpu_custom_call.1} parent=83 // pred_check_branch
          %565 = sbr.rel (%p563) target = $region104
        $region103: #{tpu_custom_call.1} parent=83 // pred_region
          %566 = dma.done [#allocation10], 16
        $region104: #{tpu_custom_call.1} parent=83 // pred_fallthru
          _
        %p567 = scmp.lt.s32.totalorder %s37, 1
        %s568 = scalar_select %p567, %s37, 1
        %p569 = scmp.lt.s32.totalorder %s38, 1
        %s570 = scalar_select %p569, %s38, 1
        %s571 = smul.addr %s568, 2
        %s572 = sadd.s32 %s570, %s571
        %s573 = smul.addr %s572, 8
        %s574 = scalar_lea.vmem %s0, %s573
        %p575 = pneg %p68
        %p576 = pneg %p65
        %p577 = scmp.lt.s32.totalorder %s37, 1
        %s578 = scalar_select %p577, %s37, 1
        %s579 = smul.addr %s578, 2
        %s580 = smul.addr %s579, 8
        %s581 = scalar_lea.vmem %s1, %s580
        %p582 = pneg %p94
        %p583 = pneg %p91
        %p584 = pneg %p115
        %p585 = pneg %p112
        %p586 = pneg %p136
        %p587 = pneg %p133
        %p588 = pneg %p157
        %p589 = pneg %p154
        %p590 = pneg %p178
        %p591 = pneg %p175
        %p592 = pneg %p199
        %p593 = pneg %p196
        %p594 = pneg %p220
        %p595 = pneg %p217
        %p596 = pneg %p241
        %p597 = pneg %p238
        %p598 = pneg %p262
        %p599 = pneg %p259
        %p600 = pneg %p283
        %p601 = pneg %p280
        %p602 = pneg %p304
        %p603 = pneg %p301
        %p604 = pneg %p325
        %p605 = pneg %p322
        %p606 = pneg %p346
        %p607 = pneg %p343
        %p608 = pneg %p367
        %p609 = pneg %p364
        %p610 = pneg %p388
        %p611 = pneg %p385
        %p612 = pneg %p416
        %p613 = pneg %p413
        %s614 = sand.u32 %s403, 1
        %s615 = scalar_lea.sflag [#allocation5], %s614
        %s616 = sand.u32 %s403, 1
        %s617 = smul.addr %s616, 8
        %s618 = scalar_lea.vmem [#allocation12], %s617
        %p619 = scmp.lt.s32.totalorder %s37, 1
        %s620 = scalar_select %p619, %s37, 1
        %p621 = scmp.lt.s32.totalorder %s38, 1
        %s622 = scalar_select %p621, %s38, 1
        %s623 = smul.addr %s620, 2
        %s624 = sadd.s32 %s622, %s623
        %s625 = smul.addr %s624, 8
        %s626 = scalar_lea.vmem %s0, %s625
        %p627 = scmp.lt.s32.totalorder %s37, 1
        %s628 = scalar_select %p627, %s37, 1
        %s629 = smul.addr %s628, 2
        %s630 = smul.addr %s629, 8
        %s631 = scalar_lea.vmem %s1, %s630
        %v633 = vld [vmem:[%s626] sm:$0xff]
        %v634 = vld [vmem:[%s631] sm:$0xff]
        %v635 = vld [vmem:[%s631 + $0x8] sm:$0xff]
        %v636 = vld [vmem:[%s2] sm:$0x1]
        %v637 = vld [vmem:[%s3] sm:$0x1]
        %vm638 = vcmask 261120
        %v639 = vsel %vm638, %v633, 0.0
        %640 = vadd.xlane.f32.xlu0 %v639
        %v641 = vpop.xlane.xlu0 %640
        %v642 = vrcp.pop 32.0
        %v643 = vmul.f32 %v641, %v642
        %v644 = vsub.f32 %v633, %v643
        %v645 = vmul.f32 %v644, %v644
        %v646 = vsel %vm638, %v645, 0.0
        %647 = vadd.xlane.f32.xlu0 %v646
        %v648 = vpop.xlane.xlu0 %647
        %v649 = vmul.f32 %v648, %v642
        %v650 = vadd.f32 %v649, 1e-05
        %v651 = vrsqrt.pop %v650
        %v652 = vmul.f32 %v644, %v651
        %v654 = vlaneseq
        %v655 = vshrl.u32 %v654, 7
        %v656 = vsub.s32 0, %v655
        %v657 = vrot.slane %v636, %v656
        %v659 = vmul.f32 %v652, %v657
        %v661 = vlaneseq
        %v662 = vshrl.u32 %v661, 7
        %v663 = vsub.s32 0, %v662
        %v664 = vrot.slane %v637, %v663
        %v666 = vadd.f32 %v659, %v664
        %v667 = vld [vmem:[#allocation3] sm:$0x1]
        %v668 = vld [vmem:[#allocation6] sm:$0x1]
        %v669 = vsel %vm638, %v634, 0.0
        %670 = vadd.xlane.f32.xlu0 %v669
        %v671 = vpop.xlane.xlu0 %670
        %v672 = vsel %vm638, %v635, 0.0
        %673 = vadd.xlane.f32.xlu0 %v672
        %v674 = vpop.xlane.xlu0 %673
        %v675 = vmul.f32 %v671, %v642
        %v676 = vmul.f32 %v674, %v642
        %v677 = vsub.f32 %v634, %v675
        %v678 = vsub.f32 %v635, %v676
        %v679 = vmul.f32 %v677, %v677
        %v680 = vmul.f32 %v678, %v678
        %v681 = vsel %vm638, %v679, 0.0
        %682 = vadd.xlane.f32.xlu0 %v681
        %v683 = vpop.xlane.xlu0 %682
        %v684 = vsel %vm638, %v680, 0.0
        %685 = vadd.xlane.f32.xlu0 %v684
        %v686 = vpop.xlane.xlu0 %685
        %v687 = vmul.f32 %v683, %v642
        %v688 = vmul.f32 %v686, %v642
        %v689 = vadd.f32 %v687, 1e-05
        %v690 = vadd.f32 %v688, 1e-05
        %v691 = vrsqrt.pop %v689
        %v692 = vrsqrt.pop %v690
        %v693 = vmul.f32 %v677, %v691
        %v694 = vmul.f32 %v678, %v692
        %v696 = vlaneseq
        %v697 = vshrl.u32 %v696, 7
        %v698 = vsub.s32 0, %v697
        %v699 = vrot.slane %v667, %v698
        %v701 = vmul.f32 %v693, %v699
        %v702 = vmul.f32 %v694, %v699
        %v704 = vlaneseq
        %v705 = vshrl.u32 %v704, 7
        %v706 = vsub.s32 0, %v705
        %v707 = vrot.slane %v668, %v706
        %v709 = vadd.f32 %v701, %v707
        %v710 = vadd.f32 %v702, %v707
        %v711 = vpack.c.bf16 %v666, %v666
        %v712 = vld [vmem:[%s6] sm:$0xf]
        %v713 = vld [vmem:[%s6 + $0x4] sm:$0xf]
        %v714 = vld [vmem:[%s6 + $0x8] sm:$0xf]
        %v715 = vld [vmem:[%s6 + $0xc] sm:$0xf]
        %v720 = vunpack.c.l.b16 %v712
        %v721 = vunpack.c.l.b16 %v713
        %v722 = vunpack.c.l.b16 %v714
        %v723 = vunpack.c.l.b16 %v715
        %v724 = vpack.c.b16 %v721, %v720
        %v725 = vpack.c.b16 %v723, %v722
        %v729 = vsel %vm638, %v711, 0
        %731 = vmatprep.subr.bf16.mxu0 0
        %732 = vmatpush1.bf16.msra.mxu0 %v724
        %733 = vmatprep.subr.bf16.mxu0 0
        %734 = vmatpush1.bf16.msra.mxu0 %v725
        %735 = vmatprep.subr.bf16.mxu0 0
        %736 = vmatpush1.bf16.msra.mxu0 0
        %737 = vmatprep.subr.bf16.mxu0 0
        %738 = vmatpush1.bf16.msra.mxu0 0
        %739 = vmatprep.subr.bf16.mxu0 0
        %740 = vmatpush1.bf16.msra.mxu0 0
        %741 = vmatprep.subr.bf16.mxu0 0
        %742 = vmatpush1.bf16.msra.mxu0 0
        %743 = vmatprep.subr.bf16.mxu0 0
        %744 = vmatpush1.bf16.msra.mxu0 0
        %745 = vmatprep.subr.bf16.mxu0 0
        %746 = vmatpush1.bf16.msra.mxu0 0
        %747 = vmatprep.subr.bf16.mxu0 0
        %748 = vmatpush1.bf16.msra.mxu0 0
        %749 = vmatprep.subr.bf16.mxu0 0
        %750 = vmatpush1.bf16.msra.mxu0 0
        %751 = vmatprep.subr.bf16.mxu0 0
        %752 = vmatpush1.bf16.msra.mxu0 0
        %753 = vmatprep.subr.bf16.mxu0 0
        %754 = vmatpush1.bf16.msra.mxu0 0
        %755 = vmatprep.subr.bf16.mxu0 0
        %756 = vmatpush1.bf16.msra.mxu0 0
        %757 = vmatprep.subr.bf16.mxu0 0
        %758 = vmatpush1.bf16.msra.mxu0 0
        %759 = vmatprep.subr.bf16.mxu0 0
        %760 = vmatpush1.bf16.msra.mxu0 0
        %761 = vmatprep.subr.bf16.mxu0 0
        %762 = vmatpush1.bf16.msra.mxu0 0
        %763 = vmatprep.mubr.bf16.mxu0 0
        %764 = vmatmul.mubr.bf16.gmra.mrb[0].mxu0 %v729
        %v765 = vpop.f32.mrb[0].mxu0
        %v766 = vadd.f32 0.0, %v765
        %v767 = vpop.f32.mrb[0].mxu0
        %v768 = vpop.f32.mrb[0].mxu0
        %v769 = vpop.f32.mrb[0].mxu0
        %770 = vdwg.mxu0
        %v771 = vpack.c.bf16 %v710, %v709
        %v772 = vld [vmem:[#allocation8] sm:$0xf]
        %v773 = vld [vmem:[#allocation8 + $0x4] sm:$0xf]
        %v774 = vld [vmem:[#allocation8 + $0x8] sm:$0xf]
        %v775 = vld [vmem:[#allocation8 + $0xc] sm:$0xf]
        %v780 = vunpack.c.l.b16 %v772
        %v781 = vunpack.c.l.b16 %v773
        %v782 = vunpack.c.l.b16 %v774
        %v783 = vunpack.c.l.b16 %v775
        %v784 = vpack.c.b16 %v781, %v780
        %v785 = vpack.c.b16 %v783, %v782
        %v789 = vsel %vm638, %v771, 0
        %791 = vmatprep.subr.bf16.mxu0 0
        %792 = vmatpush1.bf16.msra.mxu0 %v784
        %793 = vmatprep.subr.bf16.mxu0 0
        %794 = vmatpush1.bf16.msra.mxu0 %v785
        %795 = vmatprep.subr.bf16.mxu0 0
        %796 = vmatpush1.bf16.msra.mxu0 0
        %797 = vmatprep.subr.bf16.mxu0 0
        %798 = vmatpush1.bf16.msra.mxu0 0
        %799 = vmatprep.subr.bf16.mxu0 0
        %800 = vmatpush1.bf16.msra.mxu0 0
        %801 = vmatprep.subr.bf16.mxu0 0
        %802 = vmatpush1.bf16.msra.mxu0 0
        %803 = vmatprep.subr.bf16.mxu0 0
        %804 = vmatpush1.bf16.msra.mxu0 0
        %805 = vmatprep.subr.bf16.mxu0 0
        %806 = vmatpush1.bf16.msra.mxu0 0
        %807 = vmatprep.subr.bf16.mxu0 0
        %808 = vmatpush1.bf16.msra.mxu0 0
        %809 = vmatprep.subr.bf16.mxu0 0
        %810 = vmatpush1.bf16.msra.mxu0 0
        %811 = vmatprep.subr.bf16.mxu0 0
        %812 = vmatpush1.bf16.msra.mxu0 0
        %813 = vmatprep.subr.bf16.mxu0 0
        %814 = vmatpush1.bf16.msra.mxu0 0
        %815 = vmatprep.subr.bf16.mxu0 0
        %816 = vmatpush1.bf16.msra.mxu0 0
        %817 = vmatprep.subr.bf16.mxu0 0
        %818 = vmatpush1.bf16.msra.mxu0 0
        %819 = vmatprep.subr.bf16.mxu0 0
        %820 = vmatpush1.bf16.msra.mxu0 0
        %821 = vmatprep.subr.bf16.mxu0 0
        %822 = vmatpush1.bf16.msra.mxu0 0
        %823 = vmatprep.mubr.bf16.mxu0 0
        %824 = vmatmul.mubr.bf16.gmra.mrb[0].mxu0 %v789
        %v825 = vpop.f32.mrb[0].mxu0
        %v826 = vadd.f32 0.0, %v825
        %v827 = vpop.f32.mrb[0].mxu0
        %v828 = vpop.f32.mrb[0].mxu0
        %v829 = vadd.f32 0.0, %v828
        %v830 = vpop.f32.mrb[0].mxu0
        %831 = vdwg.mxu0
        %v832 = vpack.c.bf16 %v766, %v766
        %v833 = vpack.c.bf16 %v829, %v826
        %vm834 = vcmask 64512
        %v836 = vsel %vm834, %v832, 0
        %v839 = vsel %vm834, %v833, 0
        %841 = vmatprep.subr.bf16.mxu0 0
        %842 = vmatpush1.bf16.xpose.msra.mxu0 %v839
        %843 = vmatprep.subr.bf16.mxu0 0
        %844 = vmatpush1.bf16.xpose.msra.mxu0 0
        %845 = vmatprep.subr.bf16.mxu0 0
        %846 = vmatpush1.bf16.xpose.msra.mxu0 0
        %847 = vmatprep.subr.bf16.mxu0 0
        %848 = vmatpush1.bf16.xpose.msra.mxu0 0
        %849 = vmatprep.subr.bf16.mxu0 0
        %850 = vmatpush1.bf16.xpose.msra.mxu0 0
        %851 = vmatprep.subr.bf16.mxu0 0
        %852 = vmatpush1.bf16.xpose.msra.mxu0 0
        %853 = vmatprep.subr.bf16.mxu0 0
        %854 = vmatpush1.bf16.xpose.msra.mxu0 0
        %855 = vmatprep.subr.bf16.mxu0 0
        %856 = vmatpush1.bf16.xpose.msra.mxu0 0
        %857 = vmatprep.subr.bf16.mxu0 0
        %858 = vmatpush1.bf16.xpose.msra.mxu0 0
        %859 = vmatprep.subr.bf16.mxu0 0
        %860 = vmatpush1.bf16.xpose.msra.mxu0 0
        %861 = vmatprep.subr.bf16.mxu0 0
        %862 = vmatpush1.bf16.xpose.msra.mxu0 0
        %863 = vmatprep.subr.bf16.mxu0 0
        %864 = vmatpush1.bf16.xpose.msra.mxu0 0
        %865 = vmatprep.subr.bf16.mxu0 0
        %866 = vmatpush1.bf16.xpose.msra.mxu0 0
        %867 = vmatprep.subr.bf16.mxu0 0
        %868 = vmatpush1.bf16.xpose.msra.mxu0 0
        %869 = vmatprep.subr.bf16.mxu0 0
        %870 = vmatpush1.bf16.xpose.msra.mxu0 0
        %871 = vmatprep.subr.bf16.mxu0 0
        %872 = vmatpush1.bf16.xpose.msra.mxu0 0
        %873 = vmatprep.mubr.bf16.mxu0 0
        %874 = vmatmul.mubr.bf16.gmra.mrb[0].mxu0 %v836
        %v875 = vpop.f32.mrb[0].mxu0
        %v876 = vadd.f32 0.0, %v875
        %v877 = vpop.f32.mrb[0].mxu0
        %v878 = vpop.f32.mrb[0].mxu0
        %v879 = vpop.f32.mrb[0].mxu0
        %880 = vdwg.mxu0
        %vm881 = vcmask 130048
        %v882 = vsel %vm881, %v876, -inf
        %883 = vmax.xlane.f32.xlu0 %v882
        %v884 = vpop.xlane.xlu0 %883
        %v885 = vsub.f32 %v876, %v884
        %v886 = vmul.f32 %v885, 1.442695
        %v887 = vpow.pop %v886
        %v888 = vsel %vm881, %v887, 0.0
        %889 = vadd.xlane.f32.xlu0 %v888
        %v890 = vpop.xlane.xlu0 %889
        %v891 = vrcp.pop %v890
        %v892 = vmul.f32 %v887, %v891
        %v893 = vpack.c.bf16 %v892, %v892
        %895 = vrot.lane.b32.xlu0 %v833, 96
        %v896 = vpop.permute.xlu0 %895
        %v899 = vsel %vm881, %v893, 0
        %901 = vmatprep.subr.bf16.mxu0 0
        %902 = vmatpush1.bf16.msra.mxu0 %v896
        %903 = vmatprep.subr.bf16.mxu0 0
        %904 = vmatpush1.bf16.msra.mxu0 0
        %905 = vmatprep.subr.bf16.mxu0 0
        %906 = vmatpush1.bf16.msra.mxu0 0
        %907 = vmatprep.subr.bf16.mxu0 0
        %908 = vmatpush1.bf16.msra.mxu0 0
        %909 = vmatprep.subr.bf16.mxu0 0
        %910 = vmatpush1.bf16.msra.mxu0 0
        %911 = vmatprep.subr.bf16.mxu0 0
        %912 = vmatpush1.bf16.msra.mxu0 0
        %913 = vmatprep.subr.bf16.mxu0 0
        %914 = vmatpush1.bf16.msra.mxu0 0
        %915 = vmatprep.subr.bf16.mxu0 0
        %916 = vmatpush1.bf16.msra.mxu0 0
        %917 = vmatprep.subr.bf16.mxu0 0
        %918 = vmatpush1.bf16.msra.mxu0 0
        %919 = vmatprep.subr.bf16.mxu0 0
        %920 = vmatpush1.bf16.msra.mxu0 0
        %921 = vmatprep.subr.bf16.mxu0 0
        %922 = vmatpush1.bf16.msra.mxu0 0
        %923 = vmatprep.subr.bf16.mxu0 0
        %924 = vmatpush1.bf16.msra.mxu0 0
        %925 = vmatprep.subr.bf16.mxu0 0
        %926 = vmatpush1.bf16.msra.mxu0 0
        %927 = vmatprep.subr.bf16.mxu0 0
        %928 = vmatpush1.bf16.msra.mxu0 0
        %929 = vmatprep.subr.bf16.mxu0 0
        %930 = vmatpush1.bf16.msra.mxu0 0
        %931 = vmatprep.subr.bf16.mxu0 0
        %932 = vmatpush1.bf16.msra.mxu0 0
        %933 = vmatprep.mubr.bf16.mxu0 0
        %934 = vmatmul.mubr.bf16.gmra.mrb[0].mxu0 %v899
        %v935 = vpop.f32.mrb[0].mxu0
        %v936 = vadd.f32 0.0, %v935
        %v937 = vpop.f32.mrb[0].mxu0
        %v938 = vpop.f32.mrb[0].mxu0
        %v939 = vpop.f32.mrb[0].mxu0
        %940 = vdwg.mxu0
        %941 = vst.msk [vmem:[#allocation2] sm:$0xff] %vm834, %v936
        %943 = vrot.lane.b32.xlu0 %v832, 120
        %v944 = vpop.permute.xlu0 %943
        %945 = vrot.lane.b32.xlu0 %v833, 120
        %v946 = vpop.permute.xlu0 %945
        %v948 = vsel %vm834, %v944, 0
        %v951 = vsel %vm834, %v946, 0
        %953 = vmatprep.subr.bf16.mxu0 0
        %954 = vmatpush1.bf16.xpose.msra.mxu0 %v951
        %955 = vmatprep.subr.bf16.mxu0 0
        %956 = vmatpush1.bf16.xpose.msra.mxu0 0
        %957 = vmatprep.subr.bf16.mxu0 0
        %958 = vmatpush1.bf16.xpose.msra.mxu0 0
        %959 = vmatprep.subr.bf16.mxu0 0
        %960 = vmatpush1.bf16.xpose.msra.mxu0 0
        %961 = vmatprep.subr.bf16.mxu0 0
        %962 = vmatpush1.bf16.xpose.msra.mxu0 0
        %963 = vmatprep.subr.bf16.mxu0 0
        %964 = vmatpush1.bf16.xpose.msra.mxu0 0
        %965 = vmatprep.subr.bf16.mxu0 0
        %966 = vmatpush1.bf16.xpose.msra.mxu0 0
        %967 = vmatprep.subr.bf16.mxu0 0
        %968 = vmatpush1.bf16.xpose.msra.mxu0 0
        %969 = vmatprep.subr.bf16.mxu0 0
        %970 = vmatpush1.bf16.xpose.msra.mxu0 0
        %971 = vmatprep.subr.bf16.mxu0 0
        %972 = vmatpush1.bf16.xpose.msra.mxu0 0
        %973 = vmatprep.subr.bf16.mxu0 0
        %974 = vmatpush1.bf16.xpose.msra.mxu0 0
        %975 = vmatprep.subr.bf16.mxu0 0
        %976 = vmatpush1.bf16.xpose.msra.mxu0 0
        %977 = vmatprep.subr.bf16.mxu0 0
        %978 = vmatpush1.bf16.xpose.msra.mxu0 0
        %979 = vmatprep.subr.bf16.mxu0 0
        %980 = vmatpush1.bf16.xpose.msra.mxu0 0
        %981 = vmatprep.subr.bf16.mxu0 0
        %982 = vmatpush1.bf16.xpose.msra.mxu0 0
        %983 = vmatprep.subr.bf16.mxu0 0
        %984 = vmatpush1.bf16.xpose.msra.mxu0 0
        %985 = vmatprep.mubr.bf16.mxu0 0
        %986 = vmatmul.mubr.bf16.gmra.mrb[0].mxu0 %v948
        %v987 = vpop.f32.mrb[0].mxu0
        %v988 = vadd.f32 0.0, %v987
        %v989 = vpop.f32.mrb[0].mxu0
        %v990 = vpop.f32.mrb[0].mxu0
        %v991 = vpop.f32.mrb[0].mxu0
        %992 = vdwg.mxu0
        %v993 = vsel %vm881, %v988, -inf
        %994 = vmax.xlane.f32.xlu0 %v993
        %v995 = vpop.xlane.xlu0 %994
        %v996 = vsub.f32 %v988, %v995
        %v997 = vmul.f32 %v996, 1.442695
        %v998 = vpow.pop %v997
        %v999 = vsel %vm881, %v998, 0.0
        %1000 = vadd.xlane.f32.xlu0 %v999
        %v1001 = vpop.xlane.xlu0 %1000
        %v1002 = vrcp.pop %v1001
        %v1003 = vmul.f32 %v998, %v1002
        %v1004 = vpack.c.bf16 %v1003, %v1003
        %1005 = vrot.lane.b32.xlu0 %v833, 88
        %v1006 = vpop.permute.xlu0 %1005
        %v1009 = vsel %vm881, %v1004, 0
        %1011 = vmatprep.subr.bf16.mxu0 0
        %1012 = vmatpush1.bf16.msra.mxu0 %v1006
        %1013 = vmatprep.subr.bf16.mxu0 0
        %1014 = vmatpush1.bf16.msra.mxu0 0
        %1015 = vmatprep.subr.bf16.mxu0 0
        %1016 = vmatpush1.bf16.msra.mxu0 0
        %1017 = vmatprep.subr.bf16.mxu0 0
        %1018 = vmatpush1.bf16.msra.mxu0 0
        %1019 = vmatprep.subr.bf16.mxu0 0
        %1020 = vmatpush1.bf16.msra.mxu0 0
        %1021 = vmatprep.subr.bf16.mxu0 0
        %1022 = vmatpush1.bf16.msra.mxu0 0
        %1023 = vmatprep.subr.bf16.mxu0 0
        %1024 = vmatpush1.bf16.msra.mxu0 0
        %1025 = vmatprep.subr.bf16.mxu0 0
        %1026 = vmatpush1.bf16.msra.mxu0 0
        %1027 = vmatprep.subr.bf16.mxu0 0
        %1028 = vmatpush1.bf16.msra.mxu0 0
        %1029 = vmatprep.subr.bf16.mxu0 0
        %1030 = vmatpush1.bf16.msra.mxu0 0
        %1031 = vmatprep.subr.bf16.mxu0 0
        %1032 = vmatpush1.bf16.msra.mxu0 0
        %1033 = vmatprep.subr.bf16.mxu0 0
        %1034 = vmatpush1.bf16.msra.mxu0 0
        %1035 = vmatprep.subr.bf16.mxu0 0
        %1036 = vmatpush1.bf16.msra.mxu0 0
        %1037 = vmatprep.subr.bf16.mxu0 0
        %1038 = vmatpush1.bf16.msra.mxu0 0
        %1039 = vmatprep.subr.bf16.mxu0 0
        %1040 = vmatpush1.bf16.msra.mxu0 0
        %1041 = vmatprep.subr.bf16.mxu0 0
        %1042 = vmatpush1.bf16.msra.mxu0 0
        %1043 = vmatprep.mubr.bf16.mxu0 0
        %1044 = vmatmul.mubr.bf16.gmra.mrb[0].mxu0 %v1009
        %v1045 = vpop.f32.mrb[0].mxu0
        %v1046 = vadd.f32 0.0, %v1045
        %v1047 = vpop.f32.mrb[0].mxu0
        %v1048 = vpop.f32.mrb[0].mxu0
        %v1049 = vpop.f32.mrb[0].mxu0
        %1050 = vdwg.mxu0
        %1052 = vrot.lane.b32.xlu0 %v1046, 8
        %v1053 = vpop.permute.xlu0 %1052
        %vm1055 = vcmask 130112
        %1056 = vst.msk [vmem:[#allocation2] sm:$0xff] %vm1055, %v1053
        %1057 = vrot.lane.b32.xlu0 %v832, 112
        %v1058 = vpop.permute.xlu0 %1057
        %1059 = vrot.lane.b32.xlu0 %v833, 112
        %v1060 = vpop.permute.xlu0 %1059
        %v1062 = vsel %vm834, %v1058, 0
        %v1065 = vsel %vm834, %v1060, 0
        %1067 = vmatprep.subr.bf16.mxu0 0
        %1068 = vmatpush1.bf16.xpose.msra.mxu0 %v1065
        %1069 = vmatprep.subr.bf16.mxu0 0
        %1070 = vmatpush1.bf16.xpose.msra.mxu0 0
        %1071 = vmatprep.subr.bf16.mxu0 0
        %1072 = vmatpush1.bf16.xpose.msra.mxu0 0
        %1073 = vmatprep.subr.bf16.mxu0 0
        %1074 = vmatpush1.bf16.xpose.msra.mxu0 0
        %1075 = vmatprep.subr.bf16.mxu0 0
        %1076 = vmatpush1.bf16.xpose.msra.mxu0 0
        %1077 = vmatprep.subr.bf16.mxu0 0
        %1078 = vmatpush1.bf16.xpose.msra.mxu0 0
        %1079 = vmatprep.subr.bf16.mxu0 0
        %1080 = vmatpush1.bf16.xpose.msra.mxu0 0
        %1081 = vmatprep.subr.bf16.mxu0 0
        %1082 = vmatpush1.bf16.xpose.msra.mxu0 0
        %1083 = vmatprep.subr.bf16.mxu0 0
        %1084 = vmatpush1.bf16.xpose.msra.mxu0 0
        %1085 = vmatprep.subr.bf16.mxu0 0
        %1086 = vmatpush1.bf16.xpose.msra.mxu0 0
        %1087 = vmatprep.subr.bf16.mxu0 0
        %1088 = vmatpush1.bf16.xpose.msra.mxu0 0
        %1089 = vmatprep.subr.bf16.mxu0 0
        %1090 = vmatpush1.bf16.xpose.msra.mxu0 0
        %1091 = vmatprep.subr.bf16.mxu0 0
        %1092 = vmatpush1.bf16.xpose.msra.mxu0 0
        %1093 = vmatprep.subr.bf16.mxu0 0
        %1094 = vmatpush1.bf16.xpose.msra.mxu0 0
        %1095 = vmatprep.subr.bf16.mxu0 0
        %1096 = vmatpush1.bf16.xpose.msra.mxu0 0
        %1097 = vmatprep.subr.bf16.mxu0 0
        %1098 = vmatpush1.bf16.xpose.msra.mxu0 0
        %1099 = vmatprep.mubr.bf16.mxu0 0
        %1100 = vmatmul.mubr.bf16.gmra.mrb[0].mxu0 %v1062
        %v1101 = vpop.f32.mrb[0].mxu0
        %v1102 = vadd.f32 0.0, %v1101
        %v1103 = vpop.f32.mrb[0].mxu0
        %v1104 = vpop.f32.mrb[0].mxu0
        %v1105 = vpop.f32.mrb[0].mxu0
        %1106 = vdwg.mxu0
        %v1107 = vsel %vm881, %v1102, -inf
        %1108 = vmax.xlane.f32.xlu0 %v1107
        %v1109 = vpop.xlane.xlu0 %1108
        %v1110 = vsub.f32 %v1102, %v1109
        %v1111 = vmul.f32 %v1110, 1.442695
        %v1112 = vpow.pop %v1111
        %v1113 = vsel %vm881, %v1112, 0.0
        %1114 = vadd.xlane.f32.xlu0 %v1113
        %v1115 = vpop.xlane.xlu0 %1114
        %v1116 = vrcp.pop %v1115
        %v1117 = vmul.f32 %v1112, %v1116
        %v1118 = vpack.c.bf16 %v1117, %v1117
        %1119 = vrot.lane.b32.xlu0 %v833, 80
        %v1120 = vpop.permute.xlu0 %1119
        %v1123 = vsel %vm881, %v1118, 0
        %1125 = vmatprep.subr.bf16.mxu0 0
        %1126 = vmatpush1.bf16.msra.mxu0 %v1120
        %1127 = vmatprep.subr.bf16.mxu0 0
        %1128 = vmatpush1.bf16.msra.mxu0 0
        %1129 = vmatprep.subr.bf16.mxu0 0
        %1130 = vmatpush1.bf16.msra.mxu0 0
        %1131 = vmatprep.subr.bf16.mxu0 0
        %1132 = vmatpush1.bf16.msra.mxu0 0
        %1133 = vmatprep.subr.bf16.mxu0 0
        %1134 = vmatpush1.bf16.msra.mxu0 0
        %1135 = vmatprep.subr.bf16.mxu0 0
        %1136 = vmatpush1.bf16.msra.mxu0 0
        %1137 = vmatprep.subr.bf16.mxu0 0
        %1138 = vmatpush1.bf16.msra.mxu0 0
        %1139 = vmatprep.subr.bf16.mxu0 0
        %1140 = vmatpush1.bf16.msra.mxu0 0
        %1141 = vmatprep.subr.bf16.mxu0 0
        %1142 = vmatpush1.bf16.msra.mxu0 0
        %1143 = vmatprep.subr.bf16.mxu0 0
        %1144 = vmatpush1.bf16.msra.mxu0 0
        %1145 = vmatprep.subr.bf16.mxu0 0
        %1146 = vmatpush1.bf16.msra.mxu0 0
        %1147 = vmatprep.subr.bf16.mxu0 0
        %1148 = vmatpush1.bf16.msra.mxu0 0
        %1149 = vmatprep.subr.bf16.mxu0 0
        %1150 = vmatpush1.bf16.msra.mxu0 0
        %1151 = vmatprep.subr.bf16.mxu0 0
        %1152 = vmatpush1.bf16.msra.mxu0 0
        %1153 = vmatprep.subr.bf16.mxu0 0
        %1154 = vmatpush1.bf16.msra.mxu0 0
        %1155 = vmatprep.subr.bf16.mxu0 0
        %1156 = vmatpush1.bf16.msra.mxu0 0
        %1157 = vmatprep.mubr.bf16.mxu0 0
        %1158 = vmatmul.mubr.bf16.gmra.mrb[0].mxu0 %v1123
        %v1159 = vpop.f32.mrb[0].mxu0
        %v1160 = vadd.f32 0.0, %v1159
        %v1161 = vpop.f32.mrb[0].mxu0
        %v1162 = vpop.f32.mrb[0].mxu0
        %v1163 = vpop.f32.mrb[0].mxu0
        %1164 = vdwg.mxu0
        %1166 = vrot.lane.b32.xlu0 %v1160, 16
        %v1167 = vpop.permute.xlu0 %1166
        %vm1169 = vcmask 195712
        %1170 = vst.msk [vmem:[#allocation2] sm:$0xff] %vm1169, %v1167
        %1171 = vrot.lane.b32.xlu0 %v832, 104
        %v1172 = vpop.permute.xlu0 %1171
        %1173 = vrot.lane.b32.xlu0 %v833, 104
        %v1174 = vpop.permute.xlu0 %1173
        %v1176 = vsel %vm834, %v1172, 0
        %v1179 = vsel %vm834, %v1174, 0
        %1181 = vmatprep.subr.bf16.mxu0 0
        %1182 = vmatpush1.bf16.xpose.msra.mxu0 %v1179
        %1183 = vmatprep.subr.bf16.mxu0 0
        %1184 = vmatpush1.bf16.xpose.msra.mxu0 0
        %1185 = vmatprep.subr.bf16.mxu0 0
        %1186 = vmatpush1.bf16.xpose.msra.mxu0 0
        %1187 = vmatprep.subr.bf16.mxu0 0
        %1188 = vmatpush1.bf16.xpose.msra.mxu0 0
        %1189 = vmatprep.subr.bf16.mxu0 0
        %1190 = vmatpush1.bf16.xpose.msra.mxu0 0
        %1191 = vmatprep.subr.bf16.mxu0 0
        %1192 = vmatpush1.bf16.xpose.msra.mxu0 0
        %1193 = vmatprep.subr.bf16.mxu0 0
        %1194 = vmatpush1.bf16.xpose.msra.mxu0 0
        %1195 = vmatprep.subr.bf16.mxu0 0
        %1196 = vmatpush1.bf16.xpose.msra.mxu0 0
        %1197 = vmatprep.subr.bf16.mxu0 0
        %1198 = vmatpush1.bf16.xpose.msra.mxu0 0
        %1199 = vmatprep.subr.bf16.mxu0 0
        %1200 = vmatpush1.bf16.xpose.msra.mxu0 0
        %1201 = vmatprep.subr.bf16.mxu0 0
        %1202 = vmatpush1.bf16.xpose.msra.mxu0 0
        %1203 = vmatprep.subr.bf16.mxu0 0
        %1204 = vmatpush1.bf16.xpose.msra.mxu0 0
        %1205 = vmatprep.subr.bf16.mxu0 0
        %1206 = vmatpush1.bf16.xpose.msra.mxu0 0
        %1207 = vmatprep.subr.bf16.mxu0 0
        %1208 = vmatpush1.bf16.xpose.msra.mxu0 0
        %1209 = vmatprep.subr.bf16.mxu0 0
        %1210 = vmatpush1.bf16.xpose.msra.mxu0 0
        %1211 = vmatprep.subr.bf16.mxu0 0
        %1212 = vmatpush1.bf16.xpose.msra.mxu0 0
        %1213 = vmatprep.mubr.bf16.mxu0 0
        %1214 = vmatmul.mubr.bf16.gmra.mrb[0].mxu0 %v1176
        %v1215 = vpop.f32.mrb[0].mxu0
        %v1216 = vadd.f32 0.0, %v1215
        %v1217 = vpop.f32.mrb[0].mxu0
        %v1218 = vpop.f32.mrb[0].mxu0
        %v1219 = vpop.f32.mrb[0].mxu0
        %1220 = vdwg.mxu0
        %v1221 = vsel %vm881, %v1216, -inf
        %1222 = vmax.xlane.f32.xlu0 %v1221
        %v1223 = vpop.xlane.xlu0 %1222
        %v1224 = vsub.f32 %v1216, %v1223
        %v1225 = vmul.f32 %v1224, 1.442695
        %v1226 = vpow.pop %v1225
        %v1227 = vsel %vm881, %v1226, 0.0
        %1228 = vadd.xlane.f32.xlu0 %v1227
        %v1229 = vpop.xlane.xlu0 %1228
        %v1230 = vrcp.pop %v1229
        %v1231 = vmul.f32 %v1226, %v1230
        %v1232 = vpack.c.bf16 %v1231, %v1231
        %1233 = vrot.lane.b32.xlu0 %v833, 72
        %v1234 = vpop.permute.xlu0 %1233
        %v1237 = vsel %vm881, %v1232, 0
        %1239 = vmatprep.subr.bf16.mxu0 0
        %1240 = vmatpush1.bf16.msra.mxu0 %v1234
        %1241 = vmatprep.subr.bf16.mxu0 0
        %1242 = vmatpush1.bf16.msra.mxu0 0
        %1243 = vmatprep.subr.bf16.mxu0 0
        %1244 = vmatpush1.bf16.msra.mxu0 0
        %1245 = vmatprep.subr.bf16.mxu0 0
        %1246 = vmatpush1.bf16.msra.mxu0 0
        %1247 = vmatprep.subr.bf16.mxu0 0
        %1248 = vmatpush1.bf16.msra.mxu0 0
        %1249 = vmatprep.subr.bf16.mxu0 0
        %1250 = vmatpush1.bf16.msra.mxu0 0
        %1251 = vmatprep.subr.bf16.mxu0 0
        %1252 = vmatpush1.bf16.msra.mxu0 0
        %1253 = vmatprep.subr.bf16.mxu0 0
        %1254 = vmatpush1.bf16.msra.mxu0 0
        %1255 = vmatprep.subr.bf16.mxu0 0
        %1256 = vmatpush1.bf16.msra.mxu0 0
        %1257 = vmatprep.subr.bf16.mxu0 0
        %1258 = vmatpush1.bf16.msra.mxu0 0
        %1259 = vmatprep.subr.bf16.mxu0 0
        %1260 = vmatpush1.bf16.msra.mxu0 0
        %1261 = vmatprep.subr.bf16.mxu0 0
        %1262 = vmatpush1.bf16.msra.mxu0 0
        %1263 = vmatprep.subr.bf16.mxu0 0
        %1264 = vmatpush1.bf16.msra.mxu0 0
        %1265 = vmatprep.subr.bf16.mxu0 0
        %1266 = vmatpush1.bf16.msra.mxu0 0
        %1267 = vmatprep.subr.bf16.mxu0 0
        %1268 = vmatpush1.bf16.msra.mxu0 0
        %1269 = vmatprep.subr.bf16.mxu0 0
        %1270 = vmatpush1.bf16.msra.mxu0 0
        %1271 = vmatprep.mubr.bf16.mxu0 0
        %1272 = vmatmul.mubr.bf16.gmra.mrb[0].mxu0 %v1237
        %v1273 = vpop.f32.mrb[0].mxu0
        %v1274 = vadd.f32 0.0, %v1273
        %v1275 = vpop.f32.mrb[0].mxu0
        %v1276 = vpop.f32.mrb[0].mxu0
        %v1277 = vpop.f32.mrb[0].mxu0
        %1278 = vdwg.mxu0
        %1280 = vrot.lane.b32.xlu0 %v1274, 24
        %v1281 = vpop.permute.xlu0 %1280
        %vm1283 = vcmask 261312
        %1284 = vst.msk [vmem:[#allocation2] sm:$0xff] %vm1283, %v1281
        %v1285 = vld [vmem:[#allocation2] sm:$0xff]
        %v1286 = vpack.c.bf16 %v1285, %v1285
        %v1287 = vld [vmem:[#allocation9] sm:$0xf]
        %v1288 = vld [vmem:[#allocation9 + $0x4] sm:$0xf]
        %v1289 = vld [vmem:[#allocation9 + $0x8] sm:$0xf]
        %v1290 = vld [vmem:[#allocation9 + $0xc] sm:$0xf]
        %v1291 = vld [vmem:[#allocation11] sm:$0x1]
        %v1293 = vlaneseq
        %v1294 = vshrl.u32 %v1293, 7
        %v1295 = vsub.s32 0, %v1294
        %v1296 = vrot.slane %v1291, %v1295
        %v1302 = vunpack.c.l.b16 %v1287
        %v1303 = vunpack.c.l.b16 %v1288
        %v1304 = vunpack.c.l.b16 %v1289
        %v1305 = vunpack.c.l.b16 %v1290
        %v1306 = vpack.c.b16 %v1303, %v1302
        %v1307 = vpack.c.b16 %v1305, %v1304
        %v1311 = vsel %vm638, %v1286, 0
        %1313 = vmatprep.subr.bf16.mxu0 0
        %1314 = vmatpush1.bf16.msra.mxu0 %v1306
        %1315 = vmatprep.subr.bf16.mxu0 0
        %1316 = vmatpush1.bf16.msra.mxu0 %v1307
        %1317 = vmatprep.subr.bf16.mxu0 0
        %1318 = vmatpush1.bf16.msra.mxu0 0
        %1319 = vmatprep.subr.bf16.mxu0 0
        %1320 = vmatpush1.bf16.msra.mxu0 0
        %1321 = vmatprep.subr.bf16.mxu0 0
        %1322 = vmatpush1.bf16.msra.mxu0 0
        %1323 = vmatprep.subr.bf16.mxu0 0
        %1324 = vmatpush1.bf16.msra.mxu0 0
        %1325 = vmatprep.subr.bf16.mxu0 0
        %1326 = vmatpush1.bf16.msra.mxu0 0
        %1327 = vmatprep.subr.bf16.mxu0 0
        %1328 = vmatpush1.bf16.msra.mxu0 0
        %1329 = vmatprep.subr.bf16.mxu0 0
        %1330 = vmatpush1.bf16.msra.mxu0 0
        %1331 = vmatprep.subr.bf16.mxu0 0
        %1332 = vmatpush1.bf16.msra.mxu0 0
        %1333 = vmatprep.subr.bf16.mxu0 0
        %1334 = vmatpush1.bf16.msra.mxu0 0
        %1335 = vmatprep.subr.bf16.mxu0 0
        %1336 = vmatpush1.bf16.msra.mxu0 0
        %1337 = vmatprep.subr.bf16.mxu0 0
        %1338 = vmatpush1.bf16.msra.mxu0 0
        %1339 = vmatprep.subr.bf16.mxu0 0
        %1340 = vmatpush1.bf16.msra.mxu0 0
        %1341 = vmatprep.subr.bf16.mxu0 0
        %1342 = vmatpush1.bf16.msra.mxu0 0
        %1343 = vmatprep.subr.bf16.mxu0 0
        %1344 = vmatpush1.bf16.msra.mxu0 0
        %1345 = vmatprep.mubr.bf16.mxu0 0
        %1346 = vmatmul.mubr.bf16.gmra.mrb[0].mxu0 %v1311
        %v1347 = vpop.f32.mrb[0].mxu0
        %v1348 = vadd.f32 %v1296, %v1347
        %v1349 = vpop.f32.mrb[0].mxu0
        %v1350 = vpop.f32.mrb[0].mxu0
        %v1351 = vpop.f32.mrb[0].mxu0
        %1352 = vdwg.mxu0
        %v1353 = vadd.f32 %v633, %v1348
        %v1354 = vld [vmem:[%s10] sm:$0x1]
        %v1355 = vld [vmem:[%s11] sm:$0x1]
        %v1356 = vsel %vm638, %v1353, 0.0
        %1357 = vadd.xlane.f32.xlu0 %v1356
        %v1358 = vpop.xlane.xlu0 %1357
        %v1359 = vmul.f32 %v1358, %v642
        %v1360 = vsub.f32 %v1353, %v1359
        %v1361 = vmul.f32 %v1360, %v1360
        %v1362 = vsel %vm638, %v1361, 0.0
        %1363 = vadd.xlane.f32.xlu0 %v1362
        %v1364 = vpop.xlane.xlu0 %1363
        %v1365 = vmul.f32 %v1364, %v642
        %v1366 = vadd.f32 %v1365, 1e-05
        %v1367 = vrsqrt.pop %v1366
        %v1368 = vmul.f32 %v1360, %v1367
        %v1370 = vlaneseq
        %v1371 = vshrl.u32 %v1370, 7
        %v1372 = vsub.s32 0, %v1371
        %v1373 = vrot.slane %v1354, %v1372
        %v1375 = vmul.f32 %v1368, %v1373
        %v1377 = vlaneseq
        %v1378 = vshrl.u32 %v1377, 7
        %v1379 = vsub.s32 0, %v1378
        %v1380 = vrot.slane %v1355, %v1379
        %v1382 = vadd.f32 %v1375, %v1380
        %v1383 = vpack.c.bf16 %v1382, %v1382
        %v1384 = vld [vmem:[%s12] sm:$0xf]
        %v1385 = vld [vmem:[%s12 + $0x4] sm:$0xf]
        %v1386 = vld [vmem:[%s12 + $0x8] sm:$0xf]
        %v1387 = vld [vmem:[%s12 + $0xc] sm:$0xf]
        %v1388 = vld [vmem:[%s13] sm:$0x1]
        %v1390 = vlaneseq
        %v1391 = vshrl.u32 %v1390, 7
        %v1392 = vsub.s32 0, %v1391
        %v1393 = vrot.slane %v1388, %v1392
        %v1399 = vunpack.c.l.b16 %v1384
        %v1400 = vunpack.c.l.b16 %v1385
        %v1401 = vunpack.c.l.b16 %v1386
        %v1402 = vunpack.c.l.b16 %v1387
        %v1403 = vpack.c.b16 %v1400, %v1399
        %v1404 = vpack.c.b16 %v1402, %v1401
        %v1408 = vsel %vm638, %v1383, 0
        %1410 = vmatprep.subr.bf16.mxu0 0
        %1411 = vmatpush1.bf16.msra.mxu0 %v1403
        %1412 = vmatprep.subr.bf16.mxu0 0
        %1413 = vmatpush1.bf16.msra.mxu0 %v1404
        %1414 = vmatprep.subr.bf16.mxu0 0
        %1415 = vmatpush1.bf16.msra.mxu0 0
        %1416 = vmatprep.subr.bf16.mxu0 0
        %1417 = vmatpush1.bf16.msra.mxu0 0
        %1418 = vmatprep.subr.bf16.mxu0 0
        %1419 = vmatpush1.bf16.msra.mxu0 0
        %1420 = vmatprep.subr.bf16.mxu0 0
        %1421 = vmatpush1.bf16.msra.mxu0 0
        %1422 = vmatprep.subr.bf16.mxu0 0
        %1423 = vmatpush1.bf16.msra.mxu0 0
        %1424 = vmatprep.subr.bf16.mxu0 0
        %1425 = vmatpush1.bf16.msra.mxu0 0
        %1426 = vmatprep.subr.bf16.mxu0 0
        %1427 = vmatpush1.bf16.msra.mxu0 0
        %1428 = vmatprep.subr.bf16.mxu0 0
        %1429 = vmatpush1.bf16.msra.mxu0 0
        %1430 = vmatprep.subr.bf16.mxu0 0
        %1431 = vmatpush1.bf16.msra.mxu0 0
        %1432 = vmatprep.subr.bf16.mxu0 0
        %1433 = vmatpush1.bf16.msra.mxu0 0
        %1434 = vmatprep.subr.bf16.mxu0 0
        %1435 = vmatpush1.bf16.msra.mxu0 0
        %1436 = vmatprep.subr.bf16.mxu0 0
        %1437 = vmatpush1.bf16.msra.mxu0 0
        %1438 = vmatprep.subr.bf16.mxu0 0
        %1439 = vmatpush1.bf16.msra.mxu0 0
        %1440 = vmatprep.subr.bf16.mxu0 0
        %1441 = vmatpush1.bf16.msra.mxu0 0
        %1442 = vmatprep.mubr.bf16.mxu0 0
        %1443 = vmatmul.mubr.bf16.gmra.mrb[0].mxu0 %v1408
        %v1444 = vpop.f32.mrb[0].mxu0
        %v1445 = vadd.f32 %v1393, %v1444
        %v1446 = vpop.f32.mrb[0].mxu0
        %v1447 = vpop.f32.mrb[0].mxu0
        %v1448 = vpop.f32.mrb[0].mxu0
        %1449 = vdwg.mxu0
        %v1450 = vmul.f32 %v1445, 0.5
        %v1451 = vmul.f32 %v1445, 0.044715
        %v1452 = vmul.f32 %v1451, %v1445
        %v1453 = vmul.f32 %v1452, %v1445
        %v1454 = vadd.f32 %v1445, %v1453
        %v1455 = vmul.f32 %v1454, 0.7978846
        %v1456 = vtanh.pop %v1455
        %v1457 = vadd.f32 %v1456, 1.0
        %v1458 = vmul.f32 %v1450, %v1457
        %v1459 = vpack.c.bf16 %v1458, %v1458
        %v1460 = vld [vmem:[%s14] sm:$0xf]
        %v1461 = vld [vmem:[%s14 + $0x4] sm:$0xf]
        %v1462 = vld [vmem:[%s14 + $0x8] sm:$0xf]
        %v1463 = vld [vmem:[%s14 + $0xc] sm:$0xf]
        %v1464 = vld [vmem:[%s14 + $0x10] sm:$0xf]
        %v1465 = vld [vmem:[%s14 + $0x14] sm:$0xf]
        %v1466 = vld [vmem:[%s14 + $0x18] sm:$0xf]
        %v1467 = vld [vmem:[%s14 + $0x1c] sm:$0xf]
        %v1468 = vld [vmem:[%s14 + $0x20] sm:$0xf]
        %v1469 = vld [vmem:[%s14 + $0x24] sm:$0xf]
        %v1470 = vld [vmem:[%s14 + $0x28] sm:$0xf]
        %v1471 = vld [vmem:[%s14 + $0x2c] sm:$0xf]
        %v1472 = vld [vmem:[%s14 + $0x30] sm:$0xf]
        %v1473 = vld [vmem:[%s14 + $0x34] sm:$0xf]
        %v1474 = vld [vmem:[%s14 + $0x38] sm:$0xf]
        %v1475 = vld [vmem:[%s14 + $0x3c] sm:$0xf]
        %v1476 = vld [vmem:[%s15] sm:$0x1]
        %v1478 = vlaneseq
        %v1479 = vshrl.u32 %v1478, 7
        %v1480 = vsub.s32 0, %v1479
        %v1481 = vrot.slane %v1476, %v1480
        %v1499 = vunpack.c.l.b16 %v1460
        %v1500 = vunpack.c.l.b16 %v1461
        %v1501 = vunpack.c.l.b16 %v1462
        %v1502 = vunpack.c.l.b16 %v1463
        %v1503 = vunpack.c.l.b16 %v1464
        %v1504 = vunpack.c.l.b16 %v1465
        %v1505 = vunpack.c.l.b16 %v1466
        %v1506 = vunpack.c.l.b16 %v1467
        %v1507 = vunpack.c.l.b16 %v1468
        %v1508 = vunpack.c.l.b16 %v1469
        %v1509 = vunpack.c.l.b16 %v1470
        %v1510 = vunpack.c.l.b16 %v1471
        %v1511 = vunpack.c.l.b16 %v1472
        %v1512 = vunpack.c.l.b16 %v1473
        %v1513 = vunpack.c.l.b16 %v1474
        %v1514 = vunpack.c.l.b16 %v1475
        %v1515 = vpack.c.b16 %v1500, %v1499
        %v1516 = vpack.c.b16 %v1502, %v1501
        %v1517 = vpack.c.b16 %v1504, %v1503
        %v1518 = vpack.c.b16 %v1506, %v1505
        %v1519 = vpack.c.b16 %v1508, %v1507
        %v1520 = vpack.c.b16 %v1510, %v1509
        %v1521 = vpack.c.b16 %v1512, %v1511
        %v1522 = vpack.c.b16 %v1514, %v1513
        %1531 = vmatprep.subr.bf16.mxu0 0
        %1532 = vmatpush1.bf16.msra.mxu0 %v1515
        %1533 = vmatprep.subr.bf16.mxu0 0
        %1534 = vmatpush1.bf16.msra.mxu0 %v1516
        %1535 = vmatprep.subr.bf16.mxu0 0
        %1536 = vmatpush1.bf16.msra.mxu0 %v1517
        %1537 = vmatprep.subr.bf16.mxu0 0
        %1538 = vmatpush1.bf16.msra.mxu0 %v1518
        %1539 = vmatprep.subr.bf16.mxu0 0
        %1540 = vmatpush1.bf16.msra.mxu0 %v1519
        %1541 = vmatprep.subr.bf16.mxu0 0
        %1542 = vmatpush1.bf16.msra.mxu0 %v1520
        %1543 = vmatprep.subr.bf16.mxu0 0
        %1544 = vmatpush1.bf16.msra.mxu0 %v1521
        %1545 = vmatprep.subr.bf16.mxu0 0
        %1546 = vmatpush1.bf16.msra.mxu0 %v1522
        %1547 = vmatprep.subr.bf16.mxu0 0
        %1548 = vmatpush1.bf16.msra.mxu0 0
        %1549 = vmatprep.subr.bf16.mxu0 0
        %1550 = vmatpush1.bf16.msra.mxu0 0
        %1551 = vmatprep.subr.bf16.mxu0 0
        %1552 = vmatpush1.bf16.msra.mxu0 0
        %1553 = vmatprep.subr.bf16.mxu0 0
        %1554 = vmatpush1.bf16.msra.mxu0 0
        %1555 = vmatprep.subr.bf16.mxu0 0
        %1556 = vmatpush1.bf16.msra.mxu0 0
        %1557 = vmatprep.subr.bf16.mxu0 0
        %1558 = vmatpush1.bf16.msra.mxu0 0
        %1559 = vmatprep.subr.bf16.mxu0 0
        %1560 = vmatpush1.bf16.msra.mxu0 0
        %1561 = vmatprep.subr.bf16.mxu0 0
        %1562 = vmatpush1.bf16.msra.mxu0 0
        %1563 = vmatprep.mubr.bf16.mxu0 0
        %1564 = vmatmul.mubr.bf16.gmra.mrb[0].mxu0 %v1459
        %v1565 = vpop.f32.mrb[0].mxu0
        %v1566 = vadd.f32 %v1481, %v1565
        %v1567 = vpop.f32.mrb[0].mxu0
        %v1568 = vpop.f32.mrb[0].mxu0
        %v1569 = vpop.f32.mrb[0].mxu0
        %1570 = vdwg.mxu0
        %v1571 = vadd.f32 %v1353, %v1566
        %1572 = vst.msk [vmem:[%s618] sm:$0xff] %vm638, %v1571
        %s1573 = sand.u32 %s403, 1
        %s1574 = scalar_lea.sflag [#allocation5], %s1573
        %s1575 = sand.u32 %s403, 1
        %s1576 = smul.addr %s1575, 8
        %s1577 = scalar_lea.vmem [#allocation12], %s1576
        // Predicated region
        $region105: #{tpu_custom_call.1} parent=83 // pred_check
          %p1578 = pneg %p413
        $region106: #{tpu_custom_call.1} parent=83 // pred_check_branch
          %1580 = sbr.rel (%p1578) target = $region108
        $region107: #{tpu_custom_call.1} parent=83 // pred_region
          %s1582 = ssub.s32 128, 128
          %1583 = vsyncadd %s1574, %s1582
          %s1584 = smul.addr %s37, 2
          %s1585 = sadd.s32 %s38, %s1584
          %s1586 = smul.addr %s1585, 128
          %s1587 = scalar_lea.hbm %s16, %s1586
          %s1589 = sshll.u32 %s1577, 4
          %s1590 = int_to_ptr.vmem [resolvable:$true] %s1589
          %1592 = dma.vmem_to_hbm [thread:$0]  %s1590, 128, %s1587, %s1574
        $region108: #{tpu_custom_call.1} parent=83 // pred_fallthru
          _
      $region84: #{tpu_custom_call.1} parent=5 // pred_fallthru
        _
      %p1593 = scmp.le.s32.totalorder 2, %s28
      // Predicated region
      $region109: #{tpu_custom_call.1} parent=5 // pred_check
        %p1594 = pneg %p1593
      $region110: #{tpu_custom_call.1} parent=5 // pred_check_branch
        %1596 = sbr.rel (%p1594) target = $region112
      $region111: #{tpu_custom_call.1} parent=5 // pred_region
        %s1597 = ssub.s32 %s28, 2
        // Predicated region
        $region113: #{tpu_custom_call.1} parent=111 // pred_check
          %p1598 = pneg %p419
        $region114: #{tpu_custom_call.1} parent=111 // pred_check_branch
          %1600 = sbr.rel (%p1598) target = $region116
        $region115: #{tpu_custom_call.1} parent=111 // pred_region
          %s1601 = sand.u32 %s404, 1
          %s1602 = scalar_lea.sflag [#allocation5], %s1601
          %s1603 = sand.u32 %s404, 1
          %s1604 = smul.addr %s1603, 8
          %s1605 = scalar_lea.vmem [#allocation12], %s1604
          %1606 = dma.done %s1602, 128
        $region116: #{tpu_custom_call.1} parent=111 // pred_fallthru
          _
      $region112: #{tpu_custom_call.1} parent=5 // pred_fallthru
        _
    $region6: #{tpu_custom_call.1} parent=1 // loop_footer
      %s32 = sadd.s32 1, %s28
    $region7: #{tpu_custom_call.1} parent=1 // loop_footer_branch
      %27 = sbr.rel target = $region3
    $region8: #{tpu_custom_call.1} parent=1 // loop_exit
      _
    %1607 = vsyncpa [#allocation4], 1
    %s1608 = scalar_lea.sflag [#allocation4], 1
    %1609 = vsyncpa %s1608, 1
    %1610 = vsyncpa [#allocation7], 1
    %1611 = vsyncpa [#allocation10], 1
    %1612 = vsyncpa [#allocation5], 1
    %s1613 = scalar_lea.sflag [#allocation5], 1
    %1614 = vsyncpa %s1613, 1

</llo_original>
